<compile_context>
chip_gen: v7x
topology: tpu7x:2x2x1
jax: 0.10.0
libtpu: 0.0.40
codegen_flags: <defaults>
</compile_context>

<pallas_src>
import jax
import jax.numpy as jnp
from jax.experimental import pallas as pl
from jax.experimental.pallas import tpu as pltpu

INPUT_SIZE = 1100
HIDDEN_SIZE = 500
NUM_CLASSES = 5

# Lane-aligned padded sizes for the *weight* output dims only (one-time pad).
HID_PAD = 512   # 500 -> multiple of 128 (lane dim of h / K dim of W2)
OUT_PAD = 128   # 5   -> one full 128-lane vreg row => unmasked output stores


def _round_up(x, m):
    return ((x + m - 1) // m) * m


def _pick_tm(batch):
    """Pick the batch tile size."""
    if batch <= 256:
        # bf16 packs two rows per sublane pair ([16,128] per vreg): 16-row
        # granularity keeps small-batch tiles fully packed.
        return _round_up(max(batch, 1), 16)
    # Large batch: big tiles amortize the ~0.35us/step pipeline overhead, but
    # keep >= 2 grid blocks so the "parallel" axis shards across both v7x TCs.
    half = _round_up((batch + 1) // 2, 256)
    return max(256, min(1024, half))


def mlp_kernel(x_ref, w1_ref, b1_ref, w2_ref, b2_ref, o_ref):
    # Cast activations to bf16 only at the MXU input (x streams from HBM in the
    # caller's dtype; pass bf16 x to additionally halve activation traffic).
    x = x_ref[...].astype(jnp.bfloat16)
    # fc1 on the MXU: bf16 x bf16 -> f32 accumulation. K=1100 is unaligned;
    # Mosaic zero-masks the padded tail of the contraction dimension.
    h = jnp.dot(x, w1_ref[...], preferred_element_type=jnp.float32)
    # Bias + ReLU in f32 on the VPU (slack slot; v5e has no bf16 VALU path).
    h = jnp.maximum(h + b1_ref[...], 0.0)
    # fc2: cast activations to bf16 only at the MXU input.
    out = jnp.dot(h.astype(jnp.bfloat16), w2_ref[...],
                  preferred_element_type=jnp.float32)
    # bf16 writeback halves output HBM traffic; accumulation stayed in f32.
    o_ref[...] = (out + b2_ref[...]).astype(o_ref.dtype)


def prepare_params(w1, b1, w2, b2):
    """One-time pad of weight output dims + bf16 cast for storage/DMA.

    Logical params (PyTorch-equivalent, weights pre-transposed to (in, out)):
      w1 (1100, 500) f32, b1 (1, 500) f32, w2 (500, 5) f32, b2 (1, 5) f32
    Zero padding is exact: padded hidden units get bias 0, ReLU(0)=0, and hit
    zero W2 rows; padded class columns are sliced off in the wrapper.
    """
    w1p = jnp.zeros((INPUT_SIZE, HID_PAD), jnp.bfloat16)
    w1p = w1p.at[:, :HIDDEN_SIZE].set(w1.astype(jnp.bfloat16))
    b1p = jnp.zeros((1, HID_PAD), jnp.float32).at[:, :HIDDEN_SIZE].set(b1)
    w2p = jnp.zeros((HID_PAD, OUT_PAD), jnp.bfloat16)
    w2p = w2p.at[:HIDDEN_SIZE, :NUM_CLASSES].set(w2.astype(jnp.bfloat16))
    b2p = jnp.zeros((1, OUT_PAD), jnp.float32).at[:, :NUM_CLASSES].set(b2)
    return w1p, b1p, w2p, b2p


def neural_net_forward(x, w1p, b1p, w2p, b2p):
    """x: (B, INPUT_SIZE) float. Returns (B, NUM_CLASSES) f32."""
    B = x.shape[0]
    TM = _pick_tm(B)
    n_blocks = pl.cdiv(B, TM)

    cost = pl.CostEstimate(
        flops=2 * B * (INPUT_SIZE * HID_PAD + HID_PAD * OUT_PAD),
        transcendentals=0,
        bytes_accessed=(x.size * x.dtype.itemsize
                        + w1p.size * 2 + w2p.size * 2
                        + b1p.size * 4 + b2p.size * 4
                        + B * OUT_PAD * 2),
    )

    out_padded = pl.pallas_call(
        mlp_kernel,
        out_shape=jax.ShapeDtypeStruct((B, OUT_PAD), jnp.bfloat16),
        grid=(n_blocks,),
        in_specs=[
            pl.BlockSpec((TM, INPUT_SIZE), lambda i: (i, 0)),       # x streamed
            pl.BlockSpec((INPUT_SIZE, HID_PAD), lambda i: (0, 0)),  # W1 resident
            pl.BlockSpec((1, HID_PAD), lambda i: (0, 0)),           # b1 resident
            pl.BlockSpec((HID_PAD, OUT_PAD), lambda i: (0, 0)),     # W2 resident
            pl.BlockSpec((1, OUT_PAD), lambda i: (0, 0)),           # b2 resident
        ],
        out_specs=pl.BlockSpec((TM, OUT_PAD), lambda i: (i, 0)),
        compiler_params=pltpu.CompilerParams(
            dimension_semantics=("parallel",)),
        cost_estimate=cost,
    )(x, w1p, b1p, w2p, b2p)

    # Slice off the class padding; return f32 logits like the PyTorch module.
    return out_padded[:, :NUM_CLASSES].astype(jnp.float32)


def init_params(key):
    """Deterministic param init mirroring nn.Linear shapes.

    PyTorch stores weight as (out, in); we store the transpose (in, out) so
    the kernel computes x @ W + b (identical math to x @ weight.T + bias).
    """
    k1, k2, k3, k4 = jax.random.split(key, 4)
    bound1 = 1.0 / (INPUT_SIZE ** 0.5)
    bound2 = 1.0 / (HIDDEN_SIZE ** 0.5)
    w1 = jax.random.uniform(k1, (INPUT_SIZE, HIDDEN_SIZE),
                            minval=-bound1, maxval=bound1, dtype=jnp.float32)
    b1 = jax.random.uniform(k2, (1, HIDDEN_SIZE),
                            minval=-bound1, maxval=bound1, dtype=jnp.float32)
    w2 = jax.random.uniform(k3, (HIDDEN_SIZE, NUM_CLASSES),
                            minval=-bound2, maxval=bound2, dtype=jnp.float32)
    b2 = jax.random.uniform(k4, (1, NUM_CLASSES),
                            minval=-bound2, maxval=bound2, dtype=jnp.float32)
    return w1, b1, w2, b2


def reference_forward(x, w1, b1, w2, b2):
    # Mirror the kernel's bf16 storage / h recast (f32 accumulation) so the
    # tolerance check is tight.
    xq = x.astype(jnp.bfloat16).astype(jnp.float32)
    w1q = w1.astype(jnp.bfloat16).astype(jnp.float32)
    w2q = w2.astype(jnp.bfloat16).astype(jnp.float32)
    h = jnp.maximum(xq @ w1q + b1, 0.0)
    hq = h.astype(jnp.bfloat16).astype(jnp.float32)
    return hq @ w2q + b2


if __name__ == "__main__":
    key = jax.random.PRNGKey(0)
    kx, kp = jax.random.split(key)

    batch = 8
    x = jax.random.normal(kx, (batch, INPUT_SIZE), dtype=jnp.float32)
    w1, b1, w2, b2 = init_params(kp)

    # One-time: pad + cast params to the kernel's storage layout.
    w1p, b1p, w2p, b2p = prepare_params(w1, b1, w2, b2)

    fwd = jax.jit(neural_net_forward)
    out = jax.block_until_ready(fwd(x, w1p, b1p, w2p, b2p))

    ref = reference_forward(x, w1, b1, w2, b2)
    # Kernel stores logits as bf16; mirror that rounding in the reference.
    ref_q = ref.astype(jnp.bfloat16).astype(jnp.float32)
    assert out.shape == (batch, NUM_CLASSES)
    assert jnp.allclose(out, ref_q, atol=5e-3, rtol=5e-3), "mismatch vs reference"

    print("KERNEL_OK")
</pallas_src>

<mosaic_0001>
module attributes {stable_mosaic.version = 11 : i64} {
  func.func @mlp_kernel(%arg0: i32, %arg1: memref<16x1100xf32, #tpu.memory_space<vmem>>, %arg2: memref<1100x512xbf16, #tpu.memory_space<vmem>>, %arg3: memref<1x512xf32, #tpu.memory_space<vmem>>, %arg4: memref<512x128xbf16, #tpu.memory_space<vmem>>, %arg5: memref<1x128xf32, #tpu.memory_space<vmem>>, %arg6: memref<16x128xbf16, #tpu.memory_space<vmem>>) attributes {dimension_semantics = [#tpu.dimension_semantics<parallel>], iteration_bounds = array<i64: 1>, scalar_prefetch = 0 : i64, scratch_operands = 0 : i64, tpu.core_type = #tpu.core_type<tc>, window_params = [{transform_indices = @transform_0, window_bounds = array<i64: 16, 1100>}, {pipeline_mode = #tpu.pipeline_mode<synchronous>, transform_indices = @transform_1, window_bounds = array<i64: 1100, 512>}, {pipeline_mode = #tpu.pipeline_mode<synchronous>, transform_indices = @transform_2, window_bounds = array<i64: 1, 512>}, {pipeline_mode = #tpu.pipeline_mode<synchronous>, transform_indices = @transform_3, window_bounds = array<i64: 512, 128>}, {pipeline_mode = #tpu.pipeline_mode<synchronous>, transform_indices = @transform_4, window_bounds = array<i64: 1, 128>}, {transform_indices = @transform_5, window_bounds = array<i64: 16, 128>}]} {
    %c0 = arith.constant 0 : index
    %c0_0 = arith.constant 0 : index
    %0 = vector.load %arg1[%c0, %c0_0] : memref<16x1100xf32, #tpu.memory_space<vmem>>, vector<16x1100xf32>
    %1 = arith.truncf %0 : vector<16x1100xf32> to vector<16x1100xbf16>
    %c0_1 = arith.constant 0 : index
    %c0_2 = arith.constant 0 : index
    %2 = vector.load %arg2[%c0_1, %c0_2] : memref<1100x512xbf16, #tpu.memory_space<vmem>>, vector<1100x512xbf16>
    %cst = arith.constant dense<0.000000e+00> : vector<16x512xf32>
    %3 = tpu.matmul %1, %2, %cst {dimension_numbers = #tpu.dot_dimension_numbers<[1], [0], [0], [1], [0, 0, 1, 1], [], []>} : vector<16x1100xbf16>, vector<1100x512xbf16>, vector<16x512xf32> -> vector<16x512xf32>
    %c0_3 = arith.constant 0 : index
    %c0_4 = arith.constant 0 : index
    %4 = vector.load %arg3[%c0_3, %c0_4] : memref<1x512xf32, #tpu.memory_space<vmem>>, vector<1x512xf32>
    %5 = vector.broadcast %4 : vector<1x512xf32> to vector<16x512xf32>
    %6 = arith.addf %3, %5 : vector<16x512xf32>
    %cst_5 = arith.constant 0.000000e+00 : f32
    %7 = vector.broadcast %cst_5 : f32 to vector<16x512xf32>
    %8 = arith.maximumf %6, %7 : vector<16x512xf32>
    %9 = arith.truncf %8 : vector<16x512xf32> to vector<16x512xbf16>
    %c0_6 = arith.constant 0 : index
    %c0_7 = arith.constant 0 : index
    %10 = vector.load %arg4[%c0_6, %c0_7] : memref<512x128xbf16, #tpu.memory_space<vmem>>, vector<512x128xbf16>
    %cst_8 = arith.constant dense<0.000000e+00> : vector<16x128xf32>
    %11 = tpu.matmul %9, %10, %cst_8 {dimension_numbers = #tpu.dot_dimension_numbers<[1], [0], [0], [1], [0, 0, 1, 1], [], []>} : vector<16x512xbf16>, vector<512x128xbf16>, vector<16x128xf32> -> vector<16x128xf32>
    %c0_9 = arith.constant 0 : index
    %c0_10 = arith.constant 0 : index
    %12 = vector.load %arg5[%c0_9, %c0_10] : memref<1x128xf32, #tpu.memory_space<vmem>>, vector<1x128xf32>
    %13 = vector.broadcast %12 : vector<1x128xf32> to vector<16x128xf32>
    %14 = arith.addf %11, %13 : vector<16x128xf32>
    %15 = arith.truncf %14 : vector<16x128xf32> to vector<16x128xbf16>
    %c0_11 = arith.constant 0 : index
    %c0_12 = arith.constant 0 : index
    %16 = vector.load %arg6[%c0_11, %c0_12] : memref<16x128xbf16, #tpu.memory_space<vmem>>, vector<16x128xbf16>
    tpu.vector_store %arg6[%c0_11, %c0_12], %15 {strides = array<i32>} : memref<16x128xbf16, #tpu.memory_space<vmem>>, vector<16x128xbf16>,
    return
  }
  func.func @transform_0(%arg0: i32) -> (i32, i32) {
    %c0_i32 = arith.constant 0 : i32
    %c0_i32_0 = arith.constant 0 : i32
    return %arg0, %c0_i32 : i32, i32
  }
  func.func @transform_1(%arg0: i32) -> (i32, i32) {
    %c0_i32 = arith.constant 0 : i32
    %c0_i32_0 = arith.constant 0 : i32
    %c0_i32_1 = arith.constant 0 : i32
    return %c0_i32, %c0_i32_0 : i32, i32
  }
  func.func @transform_2(%arg0: i32) -> (i32, i32) {
    %c0_i32 = arith.constant 0 : i32
    %c0_i32_0 = arith.constant 0 : i32
    %c0_i32_1 = arith.constant 0 : i32
    return %c0_i32, %c0_i32_0 : i32, i32
  }
  func.func @transform_3(%arg0: i32) -> (i32, i32) {
    %c0_i32 = arith.constant 0 : i32
    %c0_i32_0 = arith.constant 0 : i32
    %c0_i32_1 = arith.constant 0 : i32
    return %c0_i32, %c0_i32_0 : i32, i32
  }
  func.func @transform_4(%arg0: i32) -> (i32, i32) {
    %c0_i32 = arith.constant 0 : i32
    %c0_i32_0 = arith.constant 0 : i32
    %c0_i32_1 = arith.constant 0 : i32
    return %c0_i32, %c0_i32_0 : i32, i32
  }
  func.func @transform_5(%arg0: i32) -> (i32, i32) {
    %c0_i32 = arith.constant 0 : i32
    %c0_i32_0 = arith.constant 0 : i32
    return %arg0, %c0_i32 : i32, i32
  }
}

</mosaic_0001>

<llo_original>
// kernel: neural_net_forward.1
$region0: #{neural_net_forward.1}
  #allocation0 [shape = 'u32[]', space=smem, size = 0x4, offset = 0x4, fixed_abs, tag = 'smem constant byte address 0x4 - core index']
  #allocation1 [shape = 'u32[144,128]{1,0:T(1,128)}', space=vmem, size = 0x12000, scoped, tag = 'internal scratch']
  %s0 = inlined_call_operand.hbm [shape: f32[8,1100], index: 0, kind: input, shape index: {}]
  %s1 = inlined_call_operand.hbm [shape: bf16[1100,512], index: 1, kind: input, shape index: {}]
  %s2 = inlined_call_operand.hbm [shape: f32[1,512], index: 2, kind: input, shape index: {}]
  %s3 = inlined_call_operand.hbm [shape: bf16[512,128], index: 3, kind: input, shape index: {}]
  %s4 = inlined_call_operand.hbm [shape: f32[1,128], index: 4, kind: input, shape index: {}]
  %s5 = inlined_call_operand.vmem [shape: bf16[8,128], index: 5, kind: output, shape index: {}]
  %s6 = sld [smem:[#allocation0]]
  $region80: #{neural_net_forward.1} parent=0
    _
  %s8 = ssub.s32 1, %s6
  %s9 = scalar_select 0, %s8, %s6
  $region1: #{neural_net_forward.1} parent=0
    #allocation2 [shape = 'u8[73728]{0}', space=vmem, size = 0x12000, scoped, tag = 'input window, operand 0, single buffered']
    #allocation3 [shape = 's32[1]{0}', space=sflag, size = 0x4, scoped, tag = 'scoped memory for neural_net_forward.1']
    #allocation4 [shape = 'u8[1130496]{0}', space=vmem, size = 0x114000, scoped, tag = 'input window, operand 1, single buffered']
    #allocation5 [shape = 's32[1]{0}', space=sflag, size = 0x4, scoped, tag = 'scoped memory for neural_net_forward.1']
    #allocation6 [shape = 'u8[2048]{0}', space=vmem, size = 0x800, scoped, tag = 'input window, operand 2, single buffered']
    #allocation7 [shape = 'u8[131072]{0}', space=vmem, size = 0x20000, scoped, tag = 'input window, operand 3, single buffered']
    #allocation8 [shape = 's32[1]{0}', space=sflag, size = 0x4, scoped, tag = 'scoped memory for neural_net_forward.1']
    #allocation9 [shape = 'u8[512]{0}', space=vmem, size = 0x400, scoped, tag = 'input window, operand 4, single buffered']
    #allocation10 [shape = 'u8[4096]{0}', space=vmem, size = 0x1000, scoped, tag = 'output window, operand 0, single buffered']
    %10 = vsyncpa [#allocation3], 0
    %11 = vsyncpa [#allocation5], 0
    %12 = vsyncpa [#allocation8], 0
    // Predicated region
    $region2: #{neural_net_forward.1} parent=1 // pred_check
      _
    $region3: #{neural_net_forward.1} parent=1 // pred_check_branch
      %14 = sbr.rel (0) target = $region5
    $region4: #{neural_net_forward.1} parent=1 // pred_region
      %s16 = ssub.s32 2304, 1152
      %17 = vsyncadd [#allocation3], %s16
      %s18 = sshll.u32 [#allocation2], 4
      %s19 = int_to_ptr.vmem [resolvable:$true] %s18
      %24 = dma.hbm_to_vmem [thread:$0]  %s0, 1152, %s19, [#allocation3], 1152, 1152, 72
    $region5: #{neural_net_forward.1} parent=1 // pred_fallthru
      _
    // Predicated region
    $region6: #{neural_net_forward.1} parent=1 // pred_check
      _
    $region7: #{neural_net_forward.1} parent=1 // pred_check_branch
      %26 = sbr.rel (0) target = $region9
    $region8: #{neural_net_forward.1} parent=1 // pred_region
      %s28 = ssub.s32 35328, 35328
      %29 = vsyncadd [#allocation5], %s28
      %s30 = sshll.u32 [#allocation4], 4
      %s31 = int_to_ptr.vmem [resolvable:$true] %s30
      %36 = dma.hbm_to_vmem [thread:$0]  %s1, 35328, %s31, [#allocation5], 256, 256, 16
    $region9: #{neural_net_forward.1} parent=1 // pred_fallthru
      _
    // Predicated region
    $region10: #{neural_net_forward.1} parent=1 // pred_check
      _
    $region11: #{neural_net_forward.1} parent=1 // pred_check_branch
      %38 = sbr.rel (0) target = $region13
    $region12: #{neural_net_forward.1} parent=1 // pred_region
      %s40 = ssub.s32 64, 64
      %41 = vsyncadd [#allocation5], %s40
      %s43 = sshll.u32 [#allocation6], 4
      %s44 = int_to_ptr.vmem [resolvable:$true] %s43
      %46 = dma.hbm_to_vmem [thread:$0]  %s2, 64, %s44, [#allocation5]
    $region13: #{neural_net_forward.1} parent=1 // pred_fallthru
      _
    // Predicated region
    $region14: #{neural_net_forward.1} parent=1 // pred_check
      _
    $region15: #{neural_net_forward.1} parent=1 // pred_check_branch
      %48 = sbr.rel (0) target = $region17
    $region16: #{neural_net_forward.1} parent=1 // pred_region
      %s50 = ssub.s32 4096, 4096
      %51 = vsyncadd [#allocation8], %s50
      %s52 = sshll.u32 [#allocation7], 4
      %s53 = int_to_ptr.vmem [resolvable:$true] %s52
      %58 = dma.hbm_to_vmem [thread:$0]  %s3, 4096, %s53, [#allocation8], 64, 64, 4
    $region17: #{neural_net_forward.1} parent=1 // pred_fallthru
      _
    // Predicated region
    $region18: #{neural_net_forward.1} parent=1 // pred_check
      _
    $region19: #{neural_net_forward.1} parent=1 // pred_check_branch
      %60 = sbr.rel (0) target = $region21
    $region20: #{neural_net_forward.1} parent=1 // pred_region
      %s62 = ssub.s32 16, 16
      %63 = vsyncadd [#allocation8], %s62
      %s65 = sshll.u32 [#allocation9], 4
      %s66 = int_to_ptr.vmem [resolvable:$true] %s65
      %68 = dma.hbm_to_vmem [thread:$0]  %s4, 16, %s66, [#allocation8]
    $region21: #{neural_net_forward.1} parent=1 // pred_fallthru
      _
    // Predicated region
    $region22: #{neural_net_forward.1} parent=1 // pred_check
      _
    $region23: #{neural_net_forward.1} parent=1 // pred_check_branch
      %70 = sbr.rel (0) target = $region25
    $region24: #{neural_net_forward.1} parent=1 // pred_region
      %71 = dma.done [#allocation3], 2304
    $region25: #{neural_net_forward.1} parent=1 // pred_fallthru
      _
    // Predicated region
    $region26: #{neural_net_forward.1} parent=1 // pred_check
      _
    $region27: #{neural_net_forward.1} parent=1 // pred_check_branch
      %73 = sbr.rel (0) target = $region29
    $region28: #{neural_net_forward.1} parent=1 // pred_region
      %74 = dma.done [#allocation5], 35328
    $region29: #{neural_net_forward.1} parent=1 // pred_fallthru
      _
    // Predicated region
    $region30: #{neural_net_forward.1} parent=1 // pred_check
      _
    $region31: #{neural_net_forward.1} parent=1 // pred_check_branch
      %76 = sbr.rel (0) target = $region33
    $region32: #{neural_net_forward.1} parent=1 // pred_region
      %77 = dma.done [#allocation5], 64
    $region33: #{neural_net_forward.1} parent=1 // pred_fallthru
      _
    // Predicated region
    $region34: #{neural_net_forward.1} parent=1 // pred_check
      _
    $region35: #{neural_net_forward.1} parent=1 // pred_check_branch
      %79 = sbr.rel (0) target = $region37
    $region36: #{neural_net_forward.1} parent=1 // pred_region
      %80 = dma.done [#allocation8], 4096
    $region37: #{neural_net_forward.1} parent=1 // pred_fallthru
      _
    // Predicated region
    $region38: #{neural_net_forward.1} parent=1 // pred_check
      _
    $region39: #{neural_net_forward.1} parent=1 // pred_check_branch
      %82 = sbr.rel (0) target = $region41
    $region40: #{neural_net_forward.1} parent=1 // pred_region
      %83 = dma.done [#allocation8], 16
    $region41: #{neural_net_forward.1} parent=1 // pred_fallthru
      _
    %v85 = vld [vmem:[#allocation2] sm:$0xff]
    %v86 = vld [vmem:[#allocation2 + $0x8] sm:$0xff]
    %v87 = vld [vmem:[#allocation2 + $0x10] sm:$0xff]
    %v88 = vld [vmem:[#allocation2 + $0x18] sm:$0xff]
    %v89 = vld [vmem:[#allocation2 + $0x20] sm:$0xff]
    %v90 = vld [vmem:[#allocation2 + $0x28] sm:$0xff]
    %v91 = vld [vmem:[#allocation2 + $0x30] sm:$0xff]
    %v92 = vld [vmem:[#allocation2 + $0x38] sm:$0xff]
    %v93 = vld [vmem:[#allocation2 + $0x40] sm:$0xff]
    %v94 = vld [vmem:[#allocation2 + $0x48] sm:$0xff]
    %v95 = vld [vmem:[#allocation2 + $0x50] sm:$0xff]
    %v96 = vld [vmem:[#allocation2 + $0x58] sm:$0xff]
    %v97 = vld [vmem:[#allocation2 + $0x60] sm:$0xff]
    %v98 = vld [vmem:[#allocation2 + $0x68] sm:$0xff]
    %v99 = vld [vmem:[#allocation2 + $0x70] sm:$0xff]
    %v100 = vld [vmem:[#allocation2 + $0x78] sm:$0xff]
    %v101 = vld [vmem:[#allocation2 + $0x80] sm:$0xff]
    %v102 = vld [vmem:[#allocation2 + $0x88] sm:$0xff]
    %v103 = vpack.c.bf16 %v94, %v85
    %v104 = vpack.c.bf16 %v95, %v86
    %v105 = vpack.c.bf16 %v96, %v87
    %v106 = vpack.c.bf16 %v97, %v88
    %v107 = vpack.c.bf16 %v98, %v89
    %v108 = vpack.c.bf16 %v99, %v90
    %v109 = vpack.c.bf16 %v100, %v91
    %v110 = vpack.c.bf16 %v101, %v92
    %v111 = vpack.c.bf16 %v102, %v93
    %v112 = vld [vmem:[#allocation4] sm:$0xff]
    %v113 = vld [vmem:[#allocation4 + $0x8] sm:$0xff]
    %v114 = vld [vmem:[#allocation4 + $0x10] sm:$0xff]
    %v115 = vld [vmem:[#allocation4 + $0x18] sm:$0xff]
    %v116 = vld [vmem:[#allocation4 + $0x20] sm:$0xff]
    %v117 = vld [vmem:[#allocation4 + $0x28] sm:$0xff]
    %v118 = vld [vmem:[#allocation4 + $0x30] sm:$0xff]
    %v119 = vld [vmem:[#allocation4 + $0x38] sm:$0xff]
    %v120 = vld [vmem:[#allocation4 + $0x40] sm:$0xff]
    %v121 = vld [vmem:[#allocation4 + $0x48] sm:$0xff]
    %v122 = vld [vmem:[#allocation4 + $0x50] sm:$0xff]
    %v123 = vld [vmem:[#allocation4 + $0x58] sm:$0xff]
    %v124 = vld [vmem:[#allocation4 + $0x60] sm:$0xff]
    %v125 = vld [vmem:[#allocation4 + $0x68] sm:$0xff]
    %v126 = vld [vmem:[#allocation4 + $0x70] sm:$0xff]
    %v127 = vld [vmem:[#allocation4 + $0x78] sm:$0xff]
    %v128 = vld [vmem:[#allocation4 + $0x80] sm:$0xff]
    %v129 = vld [vmem:[#allocation4 + $0x88] sm:$0xff]
    %v130 = vld [vmem:[#allocation4 + $0x90] sm:$0xff]
    %v131 = vld [vmem:[#allocation4 + $0x98] sm:$0xff]
    %v132 = vld [vmem:[#allocation4 + $0xa0] sm:$0xff]
    %v133 = vld [vmem:[#allocation4 + $0xa8] sm:$0xff]
    %v134 = vld [vmem:[#allocation4 + $0xb0] sm:$0xff]
    %v135 = vld [vmem:[#allocation4 + $0xb8] sm:$0xff]
    %v136 = vld [vmem:[#allocation4 + $0xc0] sm:$0xff]
    %v137 = vld [vmem:[#allocation4 + $0xc8] sm:$0xff]
    %v138 = vld [vmem:[#allocation4 + $0xd0] sm:$0xff]
    %v139 = vld [vmem:[#allocation4 + $0xd8] sm:$0xff]
    %v140 = vld [vmem:[#allocation4 + $0xe0] sm:$0xff]
    %v141 = vld [vmem:[#allocation4 + $0xe8] sm:$0xff]
    %v142 = vld [vmem:[#allocation4 + $0xf0] sm:$0xff]
    %v143 = vld [vmem:[#allocation4 + $0xf8] sm:$0xff]
    %v144 = vld [vmem:[#allocation4 + $0x100] sm:$0xff]
    %v145 = vld [vmem:[#allocation4 + $0x108] sm:$0xff]
    %v146 = vld [vmem:[#allocation4 + $0x110] sm:$0xff]
    %v147 = vld [vmem:[#allocation4 + $0x118] sm:$0xff]
    %v148 = vld [vmem:[#allocation4 + $0x120] sm:$0xff]
    %v149 = vld [vmem:[#allocation4 + $0x128] sm:$0xff]
    %v150 = vld [vmem:[#allocation4 + $0x130] sm:$0xff]
    %v151 = vld [vmem:[#allocation4 + $0x138] sm:$0xff]
    %v152 = vld [vmem:[#allocation4 + $0x140] sm:$0xff]
    %v153 = vld [vmem:[#allocation4 + $0x148] sm:$0xff]
    %v154 = vld [vmem:[#allocation4 + $0x150] sm:$0xff]
    %v155 = vld [vmem:[#allocation4 + $0x158] sm:$0xff]
    %v156 = vld [vmem:[#allocation4 + $0x160] sm:$0xff]
    %v157 = vld [vmem:[#allocation4 + $0x168] sm:$0xff]
    %v158 = vld [vmem:[#allocation4 + $0x170] sm:$0xff]
    %v159 = vld [vmem:[#allocation4 + $0x178] sm:$0xff]
    %v160 = vld [vmem:[#allocation4 + $0x180] sm:$0xff]
    %v161 = vld [vmem:[#allocation4 + $0x188] sm:$0xff]
    %v162 = vld [vmem:[#allocation4 + $0x190] sm:$0xff]
    %v163 = vld [vmem:[#allocation4 + $0x198] sm:$0xff]
    %v164 = vld [vmem:[#allocation4 + $0x1a0] sm:$0xff]
    %v165 = vld [vmem:[#allocation4 + $0x1a8] sm:$0xff]
    %v166 = vld [vmem:[#allocation4 + $0x1b0] sm:$0xff]
    %v167 = vld [vmem:[#allocation4 + $0x1b8] sm:$0xff]
    %v168 = vld [vmem:[#allocation4 + $0x1c0] sm:$0xff]
    %v169 = vld [vmem:[#allocation4 + $0x1c8] sm:$0xff]
    %v170 = vld [vmem:[#allocation4 + $0x1d0] sm:$0xff]
    %v171 = vld [vmem:[#allocation4 + $0x1d8] sm:$0xff]
    %v172 = vld [vmem:[#allocation4 + $0x1e0] sm:$0xff]
    %v173 = vld [vmem:[#allocation4 + $0x1e8] sm:$0xff]
    %v174 = vld [vmem:[#allocation4 + $0x1f0] sm:$0xff]
    %v175 = vld [vmem:[#allocation4 + $0x1f8] sm:$0xff]
    %v176 = vld [vmem:[#allocation4 + $0x200] sm:$0xff]
    %v177 = vld [vmem:[#allocation4 + $0x208] sm:$0xff]
    %v178 = vld [vmem:[#allocation4 + $0x210] sm:$0xff]
    %v179 = vld [vmem:[#allocation4 + $0x218] sm:$0xff]
    %v180 = vld [vmem:[#allocation4 + $0x220] sm:$0xff]
    %v181 = vld [vmem:[#allocation4 + $0x228] sm:$0xff]
    %v182 = vld [vmem:[#allocation4 + $0x230] sm:$0xff]
    %v183 = vld [vmem:[#allocation4 + $0x238] sm:$0xff]
    %v184 = vld [vmem:[#allocation4 + $0x240] sm:$0xff]
    %v185 = vld [vmem:[#allocation4 + $0x248] sm:$0xff]
    %v186 = vld [vmem:[#allocation4 + $0x250] sm:$0xff]
    %v187 = vld [vmem:[#allocation4 + $0x258] sm:$0xff]
    %v188 = vld [vmem:[#allocation4 + $0x260] sm:$0xff]
    %v189 = vld [vmem:[#allocation4 + $0x268] sm:$0xff]
    %v190 = vld [vmem:[#allocation4 + $0x270] sm:$0xff]
    %v191 = vld [vmem:[#allocation4 + $0x278] sm:$0xff]
    %v192 = vld [vmem:[#allocation4 + $0x280] sm:$0xff]
    %v193 = vld [vmem:[#allocation4 + $0x288] sm:$0xff]
    %v194 = vld [vmem:[#allocation4 + $0x290] sm:$0xff]
    %v195 = vld [vmem:[#allocation4 + $0x298] sm:$0xff]
    %v196 = vld [vmem:[#allocation4 + $0x2a0] sm:$0xff]
    %v197 = vld [vmem:[#allocation4 + $0x2a8] sm:$0xff]
    %v198 = vld [vmem:[#allocation4 + $0x2b0] sm:$0xff]
    %v199 = vld [vmem:[#allocation4 + $0x2b8] sm:$0xff]
    %v200 = vld [vmem:[#allocation4 + $0x2c0] sm:$0xff]
    %v201 = vld [vmem:[#allocation4 + $0x2c8] sm:$0xff]
    %v202 = vld [vmem:[#allocation4 + $0x2d0] sm:$0xff]
    %v203 = vld [vmem:[#allocation4 + $0x2d8] sm:$0xff]
    %v204 = vld [vmem:[#allocation4 + $0x2e0] sm:$0xff]
    %v205 = vld [vmem:[#allocation4 + $0x2e8] sm:$0xff]
    %v206 = vld [vmem:[#allocation4 + $0x2f0] sm:$0xff]
    %v207 = vld [vmem:[#allocation4 + $0x2f8] sm:$0xff]
    %v208 = vld [vmem:[#allocation4 + $0x300] sm:$0xff]
    %v209 = vld [vmem:[#allocation4 + $0x308] sm:$0xff]
    %v210 = vld [vmem:[#allocation4 + $0x310] sm:$0xff]
    %v211 = vld [vmem:[#allocation4 + $0x318] sm:$0xff]
    %v212 = vld [vmem:[#allocation4 + $0x320] sm:$0xff]
    %v213 = vld [vmem:[#allocation4 + $0x328] sm:$0xff]
    %v214 = vld [vmem:[#allocation4 + $0x330] sm:$0xff]
    %v215 = vld [vmem:[#allocation4 + $0x338] sm:$0xff]
    %v216 = vld [vmem:[#allocation4 + $0x340] sm:$0xff]
    %v217 = vld [vmem:[#allocation4 + $0x348] sm:$0xff]
    %v218 = vld [vmem:[#allocation4 + $0x350] sm:$0xff]
    %v219 = vld [vmem:[#allocation4 + $0x358] sm:$0xff]
    %v220 = vld [vmem:[#allocation4 + $0x360] sm:$0xff]
    %v221 = vld [vmem:[#allocation4 + $0x368] sm:$0xff]
    %v222 = vld [vmem:[#allocation4 + $0x370] sm:$0xff]
    %v223 = vld [vmem:[#allocation4 + $0x378] sm:$0xff]
    %v224 = vld [vmem:[#allocation4 + $0x380] sm:$0xff]
    %v225 = vld [vmem:[#allocation4 + $0x388] sm:$0xff]
    %v226 = vld [vmem:[#allocation4 + $0x390] sm:$0xff]
    %v227 = vld [vmem:[#allocation4 + $0x398] sm:$0xff]
    %v228 = vld [vmem:[#allocation4 + $0x3a0] sm:$0xff]
    %v229 = vld [vmem:[#allocation4 + $0x3a8] sm:$0xff]
    %v230 = vld [vmem:[#allocation4 + $0x3b0] sm:$0xff]
    %v231 = vld [vmem:[#allocation4 + $0x3b8] sm:$0xff]
    %v232 = vld [vmem:[#allocation4 + $0x3c0] sm:$0xff]
    %v233 = vld [vmem:[#allocation4 + $0x3c8] sm:$0xff]
    %v234 = vld [vmem:[#allocation4 + $0x3d0] sm:$0xff]
    %v235 = vld [vmem:[#allocation4 + $0x3d8] sm:$0xff]
    %v236 = vld [vmem:[#allocation4 + $0x3e0] sm:$0xff]
    %v237 = vld [vmem:[#allocation4 + $0x3e8] sm:$0xff]
    %v238 = vld [vmem:[#allocation4 + $0x3f0] sm:$0xff]
    %v239 = vld [vmem:[#allocation4 + $0x3f8] sm:$0xff]
    %v240 = vld [vmem:[#allocation4 + $0x400] sm:$0xff]
    %v241 = vld [vmem:[#allocation4 + $0x408] sm:$0xff]
    %v242 = vld [vmem:[#allocation4 + $0x410] sm:$0xff]
    %v243 = vld [vmem:[#allocation4 + $0x418] sm:$0xff]
    %v244 = vld [vmem:[#allocation4 + $0x420] sm:$0xff]
    %v245 = vld [vmem:[#allocation4 + $0x428] sm:$0xff]
    %v246 = vld [vmem:[#allocation4 + $0x430] sm:$0xff]
    %v247 = vld [vmem:[#allocation4 + $0x438] sm:$0xff]
    %v248 = vld [vmem:[#allocation4 + $0x440] sm:$0xff]
    %v249 = vld [vmem:[#allocation4 + $0x448] sm:$0xff]
    %v250 = vld [vmem:[#allocation4 + $0x450] sm:$0xff]
    %v251 = vld [vmem:[#allocation4 + $0x458] sm:$0xff]
    %v252 = vld [vmem:[#allocation4 + $0x460] sm:$0xff]
    %v253 = vld [vmem:[#allocation4 + $0x468] sm:$0xff]
    %v254 = vld [vmem:[#allocation4 + $0x470] sm:$0xff]
    %v255 = vld [vmem:[#allocation4 + $0x478] sm:$0xff]
    %v256 = vld [vmem:[#allocation4 + $0x480] sm:$0xff]
    %v257 = vld [vmem:[#allocation4 + $0x488] sm:$0xff]
    %v258 = vld [vmem:[#allocation4 + $0x490] sm:$0xff]
    %v259 = vld [vmem:[#allocation4 + $0x498] sm:$0xff]
    %v260 = vld [vmem:[#allocation4 + $0x4a0] sm:$0xff]
    %v261 = vld [vmem:[#allocation4 + $0x4a8] sm:$0xff]
    %v262 = vld [vmem:[#allocation4 + $0x4b0] sm:$0xff]
    %v263 = vld [vmem:[#allocation4 + $0x4b8] sm:$0xff]
    %v264 = vld [vmem:[#allocation4 + $0x4c0] sm:$0xff]
    %v265 = vld [vmem:[#allocation4 + $0x4c8] sm:$0xff]
    %v266 = vld [vmem:[#allocation4 + $0x4d0] sm:$0xff]
    %v267 = vld [vmem:[#allocation4 + $0x4d8] sm:$0xff]
    %v268 = vld [vmem:[#allocation4 + $0x4e0] sm:$0xff]
    %v269 = vld [vmem:[#allocation4 + $0x4e8] sm:$0xff]
    %v270 = vld [vmem:[#allocation4 + $0x4f0] sm:$0xff]
    %v271 = vld [vmem:[#allocation4 + $0x4f8] sm:$0xff]
    %v272 = vld [vmem:[#allocation4 + $0x500] sm:$0xff]
    %v273 = vld [vmem:[#allocation4 + $0x508] sm:$0xff]
    %v274 = vld [vmem:[#allocation4 + $0x510] sm:$0xff]
    %v275 = vld [vmem:[#allocation4 + $0x518] sm:$0xff]
    %v276 = vld [vmem:[#allocation4 + $0x520] sm:$0xff]
    %v277 = vld [vmem:[#allocation4 + $0x528] sm:$0xff]
    %v278 = vld [vmem:[#allocation4 + $0x530] sm:$0xff]
    %v279 = vld [vmem:[#allocation4 + $0x538] sm:$0xff]
    %v280 = vld [vmem:[#allocation4 + $0x540] sm:$0xff]
    %v281 = vld [vmem:[#allocation4 + $0x548] sm:$0xff]
    %v282 = vld [vmem:[#allocation4 + $0x550] sm:$0xff]
    %v283 = vld [vmem:[#allocation4 + $0x558] sm:$0xff]
    %v284 = vld [vmem:[#allocation4 + $0x560] sm:$0xff]
    %v285 = vld [vmem:[#allocation4 + $0x568] sm:$0xff]
    %v286 = vld [vmem:[#allocation4 + $0x570] sm:$0xff]
    %v287 = vld [vmem:[#allocation4 + $0x578] sm:$0xff]
    %v288 = vld [vmem:[#allocation4 + $0x580] sm:$0xff]
    %v289 = vld [vmem:[#allocation4 + $0x588] sm:$0xff]
    %v290 = vld [vmem:[#allocation4 + $0x590] sm:$0xff]
    %v291 = vld [vmem:[#allocation4 + $0x598] sm:$0xff]
    %v292 = vld [vmem:[#allocation4 + $0x5a0] sm:$0xff]
    %v293 = vld [vmem:[#allocation4 + $0x5a8] sm:$0xff]
    %v294 = vld [vmem:[#allocation4 + $0x5b0] sm:$0xff]
    %v295 = vld [vmem:[#allocation4 + $0x5b8] sm:$0xff]
    %v296 = vld [vmem:[#allocation4 + $0x5c0] sm:$0xff]
    %v297 = vld [vmem:[#allocation4 + $0x5c8] sm:$0xff]
    %v298 = vld [vmem:[#allocation4 + $0x5d0] sm:$0xff]
    %v299 = vld [vmem:[#allocation4 + $0x5d8] sm:$0xff]
    %v300 = vld [vmem:[#allocation4 + $0x5e0] sm:$0xff]
    %v301 = vld [vmem:[#allocation4 + $0x5e8] sm:$0xff]
    %v302 = vld [vmem:[#allocation4 + $0x5f0] sm:$0xff]
    %v303 = vld [vmem:[#allocation4 + $0x5f8] sm:$0xff]
    %v304 = vld [vmem:[#allocation4 + $0x600] sm:$0xff]
    %v305 = vld [vmem:[#allocation4 + $0x608] sm:$0xff]
    %v306 = vld [vmem:[#allocation4 + $0x610] sm:$0xff]
    %v307 = vld [vmem:[#allocation4 + $0x618] sm:$0xff]
    %v308 = vld [vmem:[#allocation4 + $0x620] sm:$0xff]
    %v309 = vld [vmem:[#allocation4 + $0x628] sm:$0xff]
    %v310 = vld [vmem:[#allocation4 + $0x630] sm:$0xff]
    %v311 = vld [vmem:[#allocation4 + $0x638] sm:$0xff]
    %v312 = vld [vmem:[#allocation4 + $0x640] sm:$0xff]
    %v313 = vld [vmem:[#allocation4 + $0x648] sm:$0xff]
    %v314 = vld [vmem:[#allocation4 + $0x650] sm:$0xff]
    %v315 = vld [vmem:[#allocation4 + $0x658] sm:$0xff]
    %v316 = vld [vmem:[#allocation4 + $0x660] sm:$0xff]
    %v317 = vld [vmem:[#allocation4 + $0x668] sm:$0xff]
    %v318 = vld [vmem:[#allocation4 + $0x670] sm:$0xff]
    %v319 = vld [vmem:[#allocation4 + $0x678] sm:$0xff]
    %v320 = vld [vmem:[#allocation4 + $0x680] sm:$0xff]
    %v321 = vld [vmem:[#allocation4 + $0x688] sm:$0xff]
    %v322 = vld [vmem:[#allocation4 + $0x690] sm:$0xff]
    %v323 = vld [vmem:[#allocation4 + $0x698] sm:$0xff]
    %v324 = vld [vmem:[#allocation4 + $0x6a0] sm:$0xff]
    %v325 = vld [vmem:[#allocation4 + $0x6a8] sm:$0xff]
    %v326 = vld [vmem:[#allocation4 + $0x6b0] sm:$0xff]
    %v327 = vld [vmem:[#allocation4 + $0x6b8] sm:$0xff]
    %v328 = vld [vmem:[#allocation4 + $0x6c0] sm:$0xff]
    %v329 = vld [vmem:[#allocation4 + $0x6c8] sm:$0xff]
    %v330 = vld [vmem:[#allocation4 + $0x6d0] sm:$0xff]
    %v331 = vld [vmem:[#allocation4 + $0x6d8] sm:$0xff]
    %v332 = vld [vmem:[#allocation4 + $0x6e0] sm:$0xff]
    %v333 = vld [vmem:[#allocation4 + $0x6e8] sm:$0xff]
    %v334 = vld [vmem:[#allocation4 + $0x6f0] sm:$0xff]
    %v335 = vld [vmem:[#allocation4 + $0x6f8] sm:$0xff]
    %v336 = vld [vmem:[#allocation4 + $0x700] sm:$0xff]
    %v337 = vld [vmem:[#allocation4 + $0x708] sm:$0xff]
    %v338 = vld [vmem:[#allocation4 + $0x710] sm:$0xff]
    %v339 = vld [vmem:[#allocation4 + $0x718] sm:$0xff]
    %v340 = vld [vmem:[#allocation4 + $0x720] sm:$0xff]
    %v341 = vld [vmem:[#allocation4 + $0x728] sm:$0xff]
    %v342 = vld [vmem:[#allocation4 + $0x730] sm:$0xff]
    %v343 = vld [vmem:[#allocation4 + $0x738] sm:$0xff]
    %v344 = vld [vmem:[#allocation4 + $0x740] sm:$0xff]
    %v345 = vld [vmem:[#allocation4 + $0x748] sm:$0xff]
    %v346 = vld [vmem:[#allocation4 + $0x750] sm:$0xff]
    %v347 = vld [vmem:[#allocation4 + $0x758] sm:$0xff]
    %v348 = vld [vmem:[#allocation4 + $0x760] sm:$0xff]
    %v349 = vld [vmem:[#allocation4 + $0x768] sm:$0xff]
    %v350 = vld [vmem:[#allocation4 + $0x770] sm:$0xff]
    %v351 = vld [vmem:[#allocation4 + $0x778] sm:$0xff]
    %v352 = vld [vmem:[#allocation4 + $0x780] sm:$0xff]
    %v353 = vld [vmem:[#allocation4 + $0x788] sm:$0xff]
    %v354 = vld [vmem:[#allocation4 + $0x790] sm:$0xff]
    %v355 = vld [vmem:[#allocation4 + $0x798] sm:$0xff]
    %v356 = vld [vmem:[#allocation4 + $0x7a0] sm:$0xff]
    %v357 = vld [vmem:[#allocation4 + $0x7a8] sm:$0xff]
    %v358 = vld [vmem:[#allocation4 + $0x7b0] sm:$0xff]
    %v359 = vld [vmem:[#allocation4 + $0x7b8] sm:$0xff]
    %v360 = vld [vmem:[#allocation4 + $0x7c0] sm:$0xff]
    %v361 = vld [vmem:[#allocation4 + $0x7c8] sm:$0xff]
    %v362 = vld [vmem:[#allocation4 + $0x7d0] sm:$0xff]
    %v363 = vld [vmem:[#allocation4 + $0x7d8] sm:$0xff]
    %v364 = vld [vmem:[#allocation4 + $0x7e0] sm:$0xff]
    %v365 = vld [vmem:[#allocation4 + $0x7e8] sm:$0xff]
    %v366 = vld [vmem:[#allocation4 + $0x7f0] sm:$0xff]
    %v367 = vld [vmem:[#allocation4 + $0x7f8] sm:$0xff]
    %v368 = vld [vmem:[#allocation4 + $0x800] sm:$0xff]
    %v369 = vld [vmem:[#allocation4 + $0x808] sm:$0xff]
    %v370 = vld [vmem:[#allocation4 + $0x810] sm:$0xff]
    %v371 = vld [vmem:[#allocation4 + $0x818] sm:$0xff]
    %v372 = vld [vmem:[#allocation4 + $0x820] sm:$0xff]
    %v373 = vld [vmem:[#allocation4 + $0x828] sm:$0xff]
    %v374 = vld [vmem:[#allocation4 + $0x830] sm:$0xff]
    %v375 = vld [vmem:[#allocation4 + $0x838] sm:$0xff]
    %v376 = vld [vmem:[#allocation4 + $0x840] sm:$0xff]
    %v377 = vld [vmem:[#allocation4 + $0x848] sm:$0xff]
    %v378 = vld [vmem:[#allocation4 + $0x850] sm:$0xff]
    %v379 = vld [vmem:[#allocation4 + $0x858] sm:$0xff]
    %v380 = vld [vmem:[#allocation4 + $0x860] sm:$0xff]
    %v381 = vld [vmem:[#allocation4 + $0x868] sm:$0xff]
    %v382 = vld [vmem:[#allocation4 + $0x870] sm:$0xff]
    %v383 = vld [vmem:[#allocation4 + $0x878] sm:$0xff]
    %v384 = vld [vmem:[#allocation4 + $0x880] sm:$0xff]
    %v385 = vld [vmem:[#allocation4 + $0x888] sm:$0xff]
    %v386 = vld [vmem:[#allocation4 + $0x890] sm:$0x33]
    %v387 = vld [vmem:[#allocation4 + $0x898] sm:$0x33]
    %v388 = vld [vmem:[#allocation6] sm:$0xf]
    %v390 = vlaneseq
    %v391 = vshrl.u32 %v390, 7
    %v392 = vsub.s32 0, %v391
    %v393 = vrot.slane %v388, %v392
    %v394 = vlaneseq
    %v395 = vshrl.u32 %v394, 7
    %v396 = vsub.s32 1, %v395
    %v397 = vrot.slane %v388, %v396
    %v398 = vlaneseq
    %v399 = vshrl.u32 %v398, 7
    %v400 = vsub.s32 2, %v399
    %v401 = vrot.slane %v388, %v400
    %v402 = vlaneseq
    %v403 = vshrl.u32 %v402, 7
    %v404 = vsub.s32 3, %v403
    %v405 = vrot.slane %v388, %v404
    %v686 = vunpack.c.l.b16 %v112
    %v687 = vunpack.c.h.b16 %v112
    %v688 = vunpack.c.l.b16 %v113
    %v689 = vunpack.c.h.b16 %v113
    %v690 = vunpack.c.l.b16 %v114
    %v691 = vunpack.c.h.b16 %v114
    %v692 = vunpack.c.l.b16 %v115
    %v693 = vunpack.c.h.b16 %v115
    %v694 = vunpack.c.l.b16 %v116
    %v695 = vunpack.c.h.b16 %v116
    %v696 = vunpack.c.l.b16 %v117
    %v697 = vunpack.c.h.b16 %v117
    %v698 = vunpack.c.l.b16 %v118
    %v699 = vunpack.c.h.b16 %v118
    %v700 = vunpack.c.l.b16 %v119
    %v701 = vunpack.c.h.b16 %v119
    %v702 = vunpack.c.l.b16 %v120
    %v703 = vunpack.c.h.b16 %v120
    %v704 = vunpack.c.l.b16 %v121
    %v705 = vunpack.c.h.b16 %v121
    %v706 = vunpack.c.l.b16 %v122
    %v707 = vunpack.c.h.b16 %v122
    %v708 = vunpack.c.l.b16 %v123
    %v709 = vunpack.c.h.b16 %v123
    %v710 = vunpack.c.l.b16 %v124
    %v711 = vunpack.c.h.b16 %v124
    %v712 = vunpack.c.l.b16 %v125
    %v713 = vunpack.c.h.b16 %v125
    %v714 = vunpack.c.l.b16 %v126
    %v715 = vunpack.c.h.b16 %v126
    %v716 = vunpack.c.l.b16 %v127
    %v717 = vunpack.c.h.b16 %v127
    %v718 = vunpack.c.l.b16 %v128
    %v719 = vunpack.c.h.b16 %v128
    %v720 = vunpack.c.l.b16 %v129
    %v721 = vunpack.c.h.b16 %v129
    %v722 = vunpack.c.l.b16 %v130
    %v723 = vunpack.c.h.b16 %v130
    %v724 = vunpack.c.l.b16 %v131
    %v725 = vunpack.c.h.b16 %v131
    %v726 = vunpack.c.l.b16 %v132
    %v727 = vunpack.c.h.b16 %v132
    %v728 = vunpack.c.l.b16 %v133
    %v729 = vunpack.c.h.b16 %v133
    %v730 = vunpack.c.l.b16 %v134
    %v731 = vunpack.c.h.b16 %v134
    %v732 = vunpack.c.l.b16 %v135
    %v733 = vunpack.c.h.b16 %v135
    %v734 = vunpack.c.l.b16 %v136
    %v735 = vunpack.c.h.b16 %v136
    %v736 = vunpack.c.l.b16 %v137
    %v737 = vunpack.c.h.b16 %v137
    %v738 = vunpack.c.l.b16 %v138
    %v739 = vunpack.c.h.b16 %v138
    %v740 = vunpack.c.l.b16 %v139
    %v741 = vunpack.c.h.b16 %v139
    %v742 = vunpack.c.l.b16 %v140
    %v743 = vunpack.c.h.b16 %v140
    %v744 = vunpack.c.l.b16 %v141
    %v745 = vunpack.c.h.b16 %v141
    %v746 = vunpack.c.l.b16 %v142
    %v747 = vunpack.c.h.b16 %v142
    %v748 = vunpack.c.l.b16 %v143
    %v749 = vunpack.c.h.b16 %v143
    %v750 = vunpack.c.l.b16 %v144
    %v751 = vunpack.c.h.b16 %v144
    %v752 = vunpack.c.l.b16 %v145
    %v753 = vunpack.c.h.b16 %v145
    %v754 = vunpack.c.l.b16 %v146
    %v755 = vunpack.c.h.b16 %v146
    %v756 = vunpack.c.l.b16 %v147
    %v757 = vunpack.c.h.b16 %v147
    %v758 = vunpack.c.l.b16 %v148
    %v759 = vunpack.c.h.b16 %v148
    %v760 = vunpack.c.l.b16 %v149
    %v761 = vunpack.c.h.b16 %v149
    %v762 = vunpack.c.l.b16 %v150
    %v763 = vunpack.c.h.b16 %v150
    %v764 = vunpack.c.l.b16 %v151
    %v765 = vunpack.c.h.b16 %v151
    %v766 = vunpack.c.l.b16 %v152
    %v767 = vunpack.c.h.b16 %v152
    %v768 = vunpack.c.l.b16 %v153
    %v769 = vunpack.c.h.b16 %v153
    %v770 = vunpack.c.l.b16 %v154
    %v771 = vunpack.c.h.b16 %v154
    %v772 = vunpack.c.l.b16 %v155
    %v773 = vunpack.c.h.b16 %v155
    %v774 = vunpack.c.l.b16 %v156
    %v775 = vunpack.c.h.b16 %v156
    %v776 = vunpack.c.l.b16 %v157
    %v777 = vunpack.c.h.b16 %v157
    %v778 = vunpack.c.l.b16 %v158
    %v779 = vunpack.c.h.b16 %v158
    %v780 = vunpack.c.l.b16 %v159
    %v781 = vunpack.c.h.b16 %v159
    %v782 = vunpack.c.l.b16 %v160
    %v783 = vunpack.c.h.b16 %v160
    %v784 = vunpack.c.l.b16 %v161
    %v785 = vunpack.c.h.b16 %v161
    %v786 = vunpack.c.l.b16 %v162
    %v787 = vunpack.c.h.b16 %v162
    %v788 = vunpack.c.l.b16 %v163
    %v789 = vunpack.c.h.b16 %v163
    %v790 = vunpack.c.l.b16 %v164
    %v791 = vunpack.c.h.b16 %v164
    %v792 = vunpack.c.l.b16 %v165
    %v793 = vunpack.c.h.b16 %v165
    %v794 = vunpack.c.l.b16 %v166
    %v795 = vunpack.c.h.b16 %v166
    %v796 = vunpack.c.l.b16 %v167
    %v797 = vunpack.c.h.b16 %v167
    %v798 = vunpack.c.l.b16 %v168
    %v799 = vunpack.c.h.b16 %v168
    %v800 = vunpack.c.l.b16 %v169
    %v801 = vunpack.c.h.b16 %v169
    %v802 = vunpack.c.l.b16 %v170
    %v803 = vunpack.c.h.b16 %v170
    %v804 = vunpack.c.l.b16 %v171
    %v805 = vunpack.c.h.b16 %v171
    %v806 = vunpack.c.l.b16 %v172
    %v807 = vunpack.c.h.b16 %v172
    %v808 = vunpack.c.l.b16 %v173
    %v809 = vunpack.c.h.b16 %v173
    %v810 = vunpack.c.l.b16 %v174
    %v811 = vunpack.c.h.b16 %v174
    %v812 = vunpack.c.l.b16 %v175
    %v813 = vunpack.c.h.b16 %v175
    %v814 = vunpack.c.l.b16 %v176
    %v815 = vunpack.c.h.b16 %v176
    %v816 = vunpack.c.l.b16 %v177
    %v817 = vunpack.c.h.b16 %v177
    %v818 = vunpack.c.l.b16 %v178
    %v819 = vunpack.c.h.b16 %v178
    %v820 = vunpack.c.l.b16 %v179
    %v821 = vunpack.c.h.b16 %v179
    %v822 = vunpack.c.l.b16 %v180
    %v823 = vunpack.c.h.b16 %v180
    %v824 = vunpack.c.l.b16 %v181
    %v825 = vunpack.c.h.b16 %v181
    %v826 = vunpack.c.l.b16 %v182
    %v827 = vunpack.c.h.b16 %v182
    %v828 = vunpack.c.l.b16 %v183
    %v829 = vunpack.c.h.b16 %v183
    %v830 = vunpack.c.l.b16 %v184
    %v831 = vunpack.c.h.b16 %v184
    %v832 = vunpack.c.l.b16 %v185
    %v833 = vunpack.c.h.b16 %v185
    %v834 = vunpack.c.l.b16 %v186
    %v835 = vunpack.c.h.b16 %v186
    %v836 = vunpack.c.l.b16 %v187
    %v837 = vunpack.c.h.b16 %v187
    %v838 = vunpack.c.l.b16 %v188
    %v839 = vunpack.c.h.b16 %v188
    %v840 = vunpack.c.l.b16 %v189
    %v841 = vunpack.c.h.b16 %v189
    %v842 = vunpack.c.l.b16 %v190
    %v843 = vunpack.c.h.b16 %v190
    %v844 = vunpack.c.l.b16 %v191
    %v845 = vunpack.c.h.b16 %v191
    %v846 = vunpack.c.l.b16 %v192
    %v847 = vunpack.c.h.b16 %v192
    %v848 = vunpack.c.l.b16 %v193
    %v849 = vunpack.c.h.b16 %v193
    %v850 = vunpack.c.l.b16 %v194
    %v851 = vunpack.c.h.b16 %v194
    %v852 = vunpack.c.l.b16 %v195
    %v853 = vunpack.c.h.b16 %v195
    %v854 = vunpack.c.l.b16 %v196
    %v855 = vunpack.c.h.b16 %v196
    %v856 = vunpack.c.l.b16 %v197
    %v857 = vunpack.c.h.b16 %v197
    %v858 = vunpack.c.l.b16 %v198
    %v859 = vunpack.c.h.b16 %v198
    %v860 = vunpack.c.l.b16 %v199
    %v861 = vunpack.c.h.b16 %v199
    %v862 = vunpack.c.l.b16 %v200
    %v863 = vunpack.c.h.b16 %v200
    %v864 = vunpack.c.l.b16 %v201
    %v865 = vunpack.c.h.b16 %v201
    %v866 = vunpack.c.l.b16 %v202
    %v867 = vunpack.c.h.b16 %v202
    %v868 = vunpack.c.l.b16 %v203
    %v869 = vunpack.c.h.b16 %v203
    %v870 = vunpack.c.l.b16 %v204
    %v871 = vunpack.c.h.b16 %v204
    %v872 = vunpack.c.l.b16 %v205
    %v873 = vunpack.c.h.b16 %v205
    %v874 = vunpack.c.l.b16 %v206
    %v875 = vunpack.c.h.b16 %v206
    %v876 = vunpack.c.l.b16 %v207
    %v877 = vunpack.c.h.b16 %v207
    %v878 = vunpack.c.l.b16 %v208
    %v879 = vunpack.c.h.b16 %v208
    %v880 = vunpack.c.l.b16 %v209
    %v881 = vunpack.c.h.b16 %v209
    %v882 = vunpack.c.l.b16 %v210
    %v883 = vunpack.c.h.b16 %v210
    %v884 = vunpack.c.l.b16 %v211
    %v885 = vunpack.c.h.b16 %v211
    %v886 = vunpack.c.l.b16 %v212
    %v887 = vunpack.c.h.b16 %v212
    %v888 = vunpack.c.l.b16 %v213
    %v889 = vunpack.c.h.b16 %v213
    %v890 = vunpack.c.l.b16 %v214
    %v891 = vunpack.c.h.b16 %v214
    %v892 = vunpack.c.l.b16 %v215
    %v893 = vunpack.c.h.b16 %v215
    %v894 = vunpack.c.l.b16 %v216
    %v895 = vunpack.c.h.b16 %v216
    %v896 = vunpack.c.l.b16 %v217
    %v897 = vunpack.c.h.b16 %v217
    %v898 = vunpack.c.l.b16 %v218
    %v899 = vunpack.c.h.b16 %v218
    %v900 = vunpack.c.l.b16 %v219
    %v901 = vunpack.c.h.b16 %v219
    %v902 = vunpack.c.l.b16 %v220
    %v903 = vunpack.c.h.b16 %v220
    %v904 = vunpack.c.l.b16 %v221
    %v905 = vunpack.c.h.b16 %v221
    %v906 = vunpack.c.l.b16 %v222
    %v907 = vunpack.c.h.b16 %v222
    %v908 = vunpack.c.l.b16 %v223
    %v909 = vunpack.c.h.b16 %v223
    %v910 = vunpack.c.l.b16 %v224
    %v911 = vunpack.c.h.b16 %v224
    %v912 = vunpack.c.l.b16 %v225
    %v913 = vunpack.c.h.b16 %v225
    %v914 = vunpack.c.l.b16 %v226
    %v915 = vunpack.c.h.b16 %v226
    %v916 = vunpack.c.l.b16 %v227
    %v917 = vunpack.c.h.b16 %v227
    %v918 = vunpack.c.l.b16 %v228
    %v919 = vunpack.c.h.b16 %v228
    %v920 = vunpack.c.l.b16 %v229
    %v921 = vunpack.c.h.b16 %v229
    %v922 = vunpack.c.l.b16 %v230
    %v923 = vunpack.c.h.b16 %v230
    %v924 = vunpack.c.l.b16 %v231
    %v925 = vunpack.c.h.b16 %v231
    %v926 = vunpack.c.l.b16 %v232
    %v927 = vunpack.c.h.b16 %v232
    %v928 = vunpack.c.l.b16 %v233
    %v929 = vunpack.c.h.b16 %v233
    %v930 = vunpack.c.l.b16 %v234
    %v931 = vunpack.c.h.b16 %v234
    %v932 = vunpack.c.l.b16 %v235
    %v933 = vunpack.c.h.b16 %v235
    %v934 = vunpack.c.l.b16 %v236
    %v935 = vunpack.c.h.b16 %v236
    %v936 = vunpack.c.l.b16 %v237
    %v937 = vunpack.c.h.b16 %v237
    %v938 = vunpack.c.l.b16 %v238
    %v939 = vunpack.c.h.b16 %v238
    %v940 = vunpack.c.l.b16 %v239
    %v941 = vunpack.c.h.b16 %v239
    %v942 = vunpack.c.l.b16 %v240
    %v943 = vunpack.c.h.b16 %v240
    %v944 = vunpack.c.l.b16 %v241
    %v945 = vunpack.c.h.b16 %v241
    %v946 = vunpack.c.l.b16 %v242
    %v947 = vunpack.c.h.b16 %v242
    %v948 = vunpack.c.l.b16 %v243
    %v949 = vunpack.c.h.b16 %v243
    %v950 = vunpack.c.l.b16 %v244
    %v951 = vunpack.c.h.b16 %v244
    %v952 = vunpack.c.l.b16 %v245
    %v953 = vunpack.c.h.b16 %v245
    %v954 = vunpack.c.l.b16 %v246
    %v955 = vunpack.c.h.b16 %v246
    %v956 = vunpack.c.l.b16 %v247
    %v957 = vunpack.c.h.b16 %v247
    %v958 = vunpack.c.l.b16 %v248
    %v959 = vunpack.c.h.b16 %v248
    %v960 = vunpack.c.l.b16 %v249
    %v961 = vunpack.c.h.b16 %v249
    %v962 = vunpack.c.l.b16 %v250
    %v963 = vunpack.c.h.b16 %v250
    %v964 = vunpack.c.l.b16 %v251
    %v965 = vunpack.c.h.b16 %v251
    %v966 = vunpack.c.l.b16 %v252
    %v967 = vunpack.c.h.b16 %v252
    %v968 = vunpack.c.l.b16 %v253
    %v969 = vunpack.c.h.b16 %v253
    %v970 = vunpack.c.l.b16 %v254
    %v971 = vunpack.c.h.b16 %v254
    %v972 = vunpack.c.l.b16 %v255
    %v973 = vunpack.c.h.b16 %v255
    %v974 = vunpack.c.l.b16 %v256
    %v975 = vunpack.c.h.b16 %v256
    %v976 = vunpack.c.l.b16 %v257
    %v977 = vunpack.c.h.b16 %v257
    %v978 = vunpack.c.l.b16 %v258
    %v979 = vunpack.c.h.b16 %v258
    %v980 = vunpack.c.l.b16 %v259
    %v981 = vunpack.c.h.b16 %v259
    %v982 = vunpack.c.l.b16 %v260
    %v983 = vunpack.c.h.b16 %v260
    %v984 = vunpack.c.l.b16 %v261
    %v985 = vunpack.c.h.b16 %v261
    %v986 = vunpack.c.l.b16 %v262
    %v987 = vunpack.c.h.b16 %v262
    %v988 = vunpack.c.l.b16 %v263
    %v989 = vunpack.c.h.b16 %v263
    %v990 = vunpack.c.l.b16 %v264
    %v991 = vunpack.c.h.b16 %v264
    %v992 = vunpack.c.l.b16 %v265
    %v993 = vunpack.c.h.b16 %v265
    %v994 = vunpack.c.l.b16 %v266
    %v995 = vunpack.c.h.b16 %v266
    %v996 = vunpack.c.l.b16 %v267
    %v997 = vunpack.c.h.b16 %v267
    %v998 = vunpack.c.l.b16 %v268
    %v999 = vunpack.c.h.b16 %v268
    %v1000 = vunpack.c.l.b16 %v269
    %v1001 = vunpack.c.h.b16 %v269
    %v1002 = vunpack.c.l.b16 %v270
    %v1003 = vunpack.c.h.b16 %v270
    %v1004 = vunpack.c.l.b16 %v271
    %v1005 = vunpack.c.h.b16 %v271
    %v1006 = vunpack.c.l.b16 %v272
    %v1007 = vunpack.c.h.b16 %v272
    %v1008 = vunpack.c.l.b16 %v273
    %v1009 = vunpack.c.h.b16 %v273
    %v1010 = vunpack.c.l.b16 %v274
    %v1011 = vunpack.c.h.b16 %v274
    %v1012 = vunpack.c.l.b16 %v275
    %v1013 = vunpack.c.h.b16 %v275
    %v1014 = vunpack.c.l.b16 %v276
    %v1015 = vunpack.c.h.b16 %v276
    %v1016 = vunpack.c.l.b16 %v277
    %v1017 = vunpack.c.h.b16 %v277
    %v1018 = vunpack.c.l.b16 %v278
    %v1019 = vunpack.c.h.b16 %v278
    %v1020 = vunpack.c.l.b16 %v279
    %v1021 = vunpack.c.h.b16 %v279
    %v1022 = vunpack.c.l.b16 %v280
    %v1023 = vunpack.c.h.b16 %v280
    %v1024 = vunpack.c.l.b16 %v281
    %v1025 = vunpack.c.h.b16 %v281
    %v1026 = vunpack.c.l.b16 %v282
    %v1027 = vunpack.c.h.b16 %v282
    %v1028 = vunpack.c.l.b16 %v283
    %v1029 = vunpack.c.h.b16 %v283
    %v1030 = vunpack.c.l.b16 %v284
    %v1031 = vunpack.c.h.b16 %v284
    %v1032 = vunpack.c.l.b16 %v285
    %v1033 = vunpack.c.h.b16 %v285
    %v1034 = vunpack.c.l.b16 %v286
    %v1035 = vunpack.c.h.b16 %v286
    %v1036 = vunpack.c.l.b16 %v287
    %v1037 = vunpack.c.h.b16 %v287
    %v1038 = vunpack.c.l.b16 %v288
    %v1039 = vunpack.c.h.b16 %v288
    %v1040 = vunpack.c.l.b16 %v289
    %v1041 = vunpack.c.h.b16 %v289
    %v1042 = vunpack.c.l.b16 %v290
    %v1043 = vunpack.c.h.b16 %v290
    %v1044 = vunpack.c.l.b16 %v291
    %v1045 = vunpack.c.h.b16 %v291
    %v1046 = vunpack.c.l.b16 %v292
    %v1047 = vunpack.c.h.b16 %v292
    %v1048 = vunpack.c.l.b16 %v293
    %v1049 = vunpack.c.h.b16 %v293
    %v1050 = vunpack.c.l.b16 %v294
    %v1051 = vunpack.c.h.b16 %v294
    %v1052 = vunpack.c.l.b16 %v295
    %v1053 = vunpack.c.h.b16 %v295
    %v1054 = vunpack.c.l.b16 %v296
    %v1055 = vunpack.c.h.b16 %v296
    %v1056 = vunpack.c.l.b16 %v297
    %v1057 = vunpack.c.h.b16 %v297
    %v1058 = vunpack.c.l.b16 %v298
    %v1059 = vunpack.c.h.b16 %v298
    %v1060 = vunpack.c.l.b16 %v299
    %v1061 = vunpack.c.h.b16 %v299
    %v1062 = vunpack.c.l.b16 %v300
    %v1063 = vunpack.c.h.b16 %v300
    %v1064 = vunpack.c.l.b16 %v301
    %v1065 = vunpack.c.h.b16 %v301
    %v1066 = vunpack.c.l.b16 %v302
    %v1067 = vunpack.c.h.b16 %v302
    %v1068 = vunpack.c.l.b16 %v303
    %v1069 = vunpack.c.h.b16 %v303
    %v1070 = vunpack.c.l.b16 %v304
    %v1071 = vunpack.c.h.b16 %v304
    %v1072 = vunpack.c.l.b16 %v305
    %v1073 = vunpack.c.h.b16 %v305
    %v1074 = vunpack.c.l.b16 %v306
    %v1075 = vunpack.c.h.b16 %v306
    %v1076 = vunpack.c.l.b16 %v307
    %v1077 = vunpack.c.h.b16 %v307
    %v1078 = vunpack.c.l.b16 %v308
    %v1079 = vunpack.c.h.b16 %v308
    %v1080 = vunpack.c.l.b16 %v309
    %v1081 = vunpack.c.h.b16 %v309
    %v1082 = vunpack.c.l.b16 %v310
    %v1083 = vunpack.c.h.b16 %v310
    %v1084 = vunpack.c.l.b16 %v311
    %v1085 = vunpack.c.h.b16 %v311
    %v1086 = vunpack.c.l.b16 %v312
    %v1087 = vunpack.c.h.b16 %v312
    %v1088 = vunpack.c.l.b16 %v313
    %v1089 = vunpack.c.h.b16 %v313
    %v1090 = vunpack.c.l.b16 %v314
    %v1091 = vunpack.c.h.b16 %v314
    %v1092 = vunpack.c.l.b16 %v315
    %v1093 = vunpack.c.h.b16 %v315
    %v1094 = vunpack.c.l.b16 %v316
    %v1095 = vunpack.c.h.b16 %v316
    %v1096 = vunpack.c.l.b16 %v317
    %v1097 = vunpack.c.h.b16 %v317
    %v1098 = vunpack.c.l.b16 %v318
    %v1099 = vunpack.c.h.b16 %v318
    %v1100 = vunpack.c.l.b16 %v319
    %v1101 = vunpack.c.h.b16 %v319
    %v1102 = vunpack.c.l.b16 %v320
    %v1103 = vunpack.c.h.b16 %v320
    %v1104 = vunpack.c.l.b16 %v321
    %v1105 = vunpack.c.h.b16 %v321
    %v1106 = vunpack.c.l.b16 %v322
    %v1107 = vunpack.c.h.b16 %v322
    %v1108 = vunpack.c.l.b16 %v323
    %v1109 = vunpack.c.h.b16 %v323
    %v1110 = vunpack.c.l.b16 %v324
    %v1111 = vunpack.c.h.b16 %v324
    %v1112 = vunpack.c.l.b16 %v325
    %v1113 = vunpack.c.h.b16 %v325
    %v1114 = vunpack.c.l.b16 %v326
    %v1115 = vunpack.c.h.b16 %v326
    %v1116 = vunpack.c.l.b16 %v327
    %v1117 = vunpack.c.h.b16 %v327
    %v1118 = vunpack.c.l.b16 %v328
    %v1119 = vunpack.c.h.b16 %v328
    %v1120 = vunpack.c.l.b16 %v329
    %v1121 = vunpack.c.h.b16 %v329
    %v1122 = vunpack.c.l.b16 %v330
    %v1123 = vunpack.c.h.b16 %v330
    %v1124 = vunpack.c.l.b16 %v331
    %v1125 = vunpack.c.h.b16 %v331
    %v1126 = vunpack.c.l.b16 %v332
    %v1127 = vunpack.c.h.b16 %v332
    %v1128 = vunpack.c.l.b16 %v333
    %v1129 = vunpack.c.h.b16 %v333
    %v1130 = vunpack.c.l.b16 %v334
    %v1131 = vunpack.c.h.b16 %v334
    %v1132 = vunpack.c.l.b16 %v335
    %v1133 = vunpack.c.h.b16 %v335
    %v1134 = vunpack.c.l.b16 %v336
    %v1135 = vunpack.c.h.b16 %v336
    %v1136 = vunpack.c.l.b16 %v337
    %v1137 = vunpack.c.h.b16 %v337
    %v1138 = vunpack.c.l.b16 %v338
    %v1139 = vunpack.c.h.b16 %v338
    %v1140 = vunpack.c.l.b16 %v339
    %v1141 = vunpack.c.h.b16 %v339
    %v1142 = vunpack.c.l.b16 %v340
    %v1143 = vunpack.c.h.b16 %v340
    %v1144 = vunpack.c.l.b16 %v341
    %v1145 = vunpack.c.h.b16 %v341
    %v1146 = vunpack.c.l.b16 %v342
    %v1147 = vunpack.c.h.b16 %v342
    %v1148 = vunpack.c.l.b16 %v343
    %v1149 = vunpack.c.h.b16 %v343
    %v1150 = vunpack.c.l.b16 %v344
    %v1151 = vunpack.c.h.b16 %v344
    %v1152 = vunpack.c.l.b16 %v345
    %v1153 = vunpack.c.h.b16 %v345
    %v1154 = vunpack.c.l.b16 %v346
    %v1155 = vunpack.c.h.b16 %v346
    %v1156 = vunpack.c.l.b16 %v347
    %v1157 = vunpack.c.h.b16 %v347
    %v1158 = vunpack.c.l.b16 %v348
    %v1159 = vunpack.c.h.b16 %v348
    %v1160 = vunpack.c.l.b16 %v349
    %v1161 = vunpack.c.h.b16 %v349
    %v1162 = vunpack.c.l.b16 %v350
    %v1163 = vunpack.c.h.b16 %v350
    %v1164 = vunpack.c.l.b16 %v351
    %v1165 = vunpack.c.h.b16 %v351
    %v1166 = vunpack.c.l.b16 %v352
    %v1167 = vunpack.c.h.b16 %v352
    %v1168 = vunpack.c.l.b16 %v353
    %v1169 = vunpack.c.h.b16 %v353
    %v1170 = vunpack.c.l.b16 %v354
    %v1171 = vunpack.c.h.b16 %v354
    %v1172 = vunpack.c.l.b16 %v355
    %v1173 = vunpack.c.h.b16 %v355
    %v1174 = vunpack.c.l.b16 %v356
    %v1175 = vunpack.c.h.b16 %v356
    %v1176 = vunpack.c.l.b16 %v357
    %v1177 = vunpack.c.h.b16 %v357
    %v1178 = vunpack.c.l.b16 %v358
    %v1179 = vunpack.c.h.b16 %v358
    %v1180 = vunpack.c.l.b16 %v359
    %v1181 = vunpack.c.h.b16 %v359
    %v1182 = vunpack.c.l.b16 %v360
    %v1183 = vunpack.c.h.b16 %v360
    %v1184 = vunpack.c.l.b16 %v361
    %v1185 = vunpack.c.h.b16 %v361
    %v1186 = vunpack.c.l.b16 %v362
    %v1187 = vunpack.c.h.b16 %v362
    %v1188 = vunpack.c.l.b16 %v363
    %v1189 = vunpack.c.h.b16 %v363
    %v1190 = vunpack.c.l.b16 %v364
    %v1191 = vunpack.c.h.b16 %v364
    %v1192 = vunpack.c.l.b16 %v365
    %v1193 = vunpack.c.h.b16 %v365
    %v1194 = vunpack.c.l.b16 %v366
    %v1195 = vunpack.c.h.b16 %v366
    %v1196 = vunpack.c.l.b16 %v367
    %v1197 = vunpack.c.h.b16 %v367
    %v1198 = vunpack.c.l.b16 %v368
    %v1199 = vunpack.c.h.b16 %v368
    %v1200 = vunpack.c.l.b16 %v369
    %v1201 = vunpack.c.h.b16 %v369
    %v1202 = vunpack.c.l.b16 %v370
    %v1203 = vunpack.c.h.b16 %v370
    %v1204 = vunpack.c.l.b16 %v371
    %v1205 = vunpack.c.h.b16 %v371
    %v1206 = vunpack.c.l.b16 %v372
    %v1207 = vunpack.c.h.b16 %v372
    %v1208 = vunpack.c.l.b16 %v373
    %v1209 = vunpack.c.h.b16 %v373
    %v1210 = vunpack.c.l.b16 %v374
    %v1211 = vunpack.c.h.b16 %v374
    %v1212 = vunpack.c.l.b16 %v375
    %v1213 = vunpack.c.h.b16 %v375
    %v1214 = vunpack.c.l.b16 %v376
    %v1215 = vunpack.c.h.b16 %v376
    %v1216 = vunpack.c.l.b16 %v377
    %v1217 = vunpack.c.h.b16 %v377
    %v1218 = vunpack.c.l.b16 %v378
    %v1219 = vunpack.c.h.b16 %v378
    %v1220 = vunpack.c.l.b16 %v379
    %v1221 = vunpack.c.h.b16 %v379
    %v1222 = vunpack.c.l.b16 %v380
    %v1223 = vunpack.c.h.b16 %v380
    %v1224 = vunpack.c.l.b16 %v381
    %v1225 = vunpack.c.h.b16 %v381
    %v1226 = vunpack.c.l.b16 %v382
    %v1227 = vunpack.c.h.b16 %v382
    %v1228 = vunpack.c.l.b16 %v383
    %v1229 = vunpack.c.h.b16 %v383
    %v1230 = vunpack.c.l.b16 %v384
    %v1231 = vunpack.c.h.b16 %v384
    %v1232 = vunpack.c.l.b16 %v385
    %v1233 = vunpack.c.h.b16 %v385
    %v1234 = vunpack.c.l.b16 %v386
    %v1235 = vunpack.c.h.b16 %v386
    %v1236 = vunpack.c.l.b16 %v387
    %v1237 = vunpack.c.h.b16 %v387
    %v1238 = vpack.c.b16 %v690, %v686
    %v1239 = vpack.c.b16 %v691, %v687
    %v1240 = vpack.c.b16 %v692, %v688
    %v1241 = vpack.c.b16 %v693, %v689
    %v1242 = vpack.c.b16 %v698, %v694
    %v1243 = vpack.c.b16 %v699, %v695
    %v1244 = vpack.c.b16 %v700, %v696
    %v1245 = vpack.c.b16 %v701, %v697
    %v1246 = vpack.c.b16 %v706, %v702
    %v1247 = vpack.c.b16 %v707, %v703
    %v1248 = vpack.c.b16 %v708, %v704
    %v1249 = vpack.c.b16 %v709, %v705
    %v1250 = vpack.c.b16 %v714, %v710
    %v1251 = vpack.c.b16 %v715, %v711
    %v1252 = vpack.c.b16 %v716, %v712
    %v1253 = vpack.c.b16 %v717, %v713
    %v1254 = vpack.c.b16 %v722, %v718
    %v1255 = vpack.c.b16 %v723, %v719
    %v1256 = vpack.c.b16 %v724, %v720
    %v1257 = vpack.c.b16 %v725, %v721
    %v1258 = vpack.c.b16 %v730, %v726
    %v1259 = vpack.c.b16 %v731, %v727
    %v1260 = vpack.c.b16 %v732, %v728
    %v1261 = vpack.c.b16 %v733, %v729
    %v1262 = vpack.c.b16 %v738, %v734
    %v1263 = vpack.c.b16 %v739, %v735
    %v1264 = vpack.c.b16 %v740, %v736
    %v1265 = vpack.c.b16 %v741, %v737
    %v1266 = vpack.c.b16 %v746, %v742
    %v1267 = vpack.c.b16 %v747, %v743
    %v1268 = vpack.c.b16 %v748, %v744
    %v1269 = vpack.c.b16 %v749, %v745
    %v1270 = vpack.c.b16 %v754, %v750
    %v1271 = vpack.c.b16 %v755, %v751
    %v1272 = vpack.c.b16 %v756, %v752
    %v1273 = vpack.c.b16 %v757, %v753
    %v1274 = vpack.c.b16 %v762, %v758
    %v1275 = vpack.c.b16 %v763, %v759
    %v1276 = vpack.c.b16 %v764, %v760
    %v1277 = vpack.c.b16 %v765, %v761
    %v1278 = vpack.c.b16 %v770, %v766
    %v1279 = vpack.c.b16 %v771, %v767
    %v1280 = vpack.c.b16 %v772, %v768
    %v1281 = vpack.c.b16 %v773, %v769
    %v1282 = vpack.c.b16 %v778, %v774
    %v1283 = vpack.c.b16 %v779, %v775
    %v1284 = vpack.c.b16 %v780, %v776
    %v1285 = vpack.c.b16 %v781, %v777
    %v1286 = vpack.c.b16 %v786, %v782
    %v1287 = vpack.c.b16 %v787, %v783
    %v1288 = vpack.c.b16 %v788, %v784
    %v1289 = vpack.c.b16 %v789, %v785
    %v1290 = vpack.c.b16 %v794, %v790
    %v1291 = vpack.c.b16 %v795, %v791
    %v1292 = vpack.c.b16 %v796, %v792
    %v1293 = vpack.c.b16 %v797, %v793
    %v1294 = vpack.c.b16 %v802, %v798
    %v1295 = vpack.c.b16 %v803, %v799
    %v1296 = vpack.c.b16 %v804, %v800
    %v1297 = vpack.c.b16 %v805, %v801
    %v1298 = vpack.c.b16 %v810, %v806
    %v1299 = vpack.c.b16 %v811, %v807
    %v1300 = vpack.c.b16 %v812, %v808
    %v1301 = vpack.c.b16 %v813, %v809
    %v1302 = vpack.c.b16 %v818, %v814
    %v1303 = vpack.c.b16 %v819, %v815
    %v1304 = vpack.c.b16 %v820, %v816
    %v1305 = vpack.c.b16 %v821, %v817
    %v1306 = vpack.c.b16 %v826, %v822
    %v1307 = vpack.c.b16 %v827, %v823
    %v1308 = vpack.c.b16 %v828, %v824
    %v1309 = vpack.c.b16 %v829, %v825
    %v1310 = vpack.c.b16 %v834, %v830
    %v1311 = vpack.c.b16 %v835, %v831
    %v1312 = vpack.c.b16 %v836, %v832
    %v1313 = vpack.c.b16 %v837, %v833
    %v1314 = vpack.c.b16 %v842, %v838
    %v1315 = vpack.c.b16 %v843, %v839
    %v1316 = vpack.c.b16 %v844, %v840
    %v1317 = vpack.c.b16 %v845, %v841
    %v1318 = vpack.c.b16 %v850, %v846
    %v1319 = vpack.c.b16 %v851, %v847
    %v1320 = vpack.c.b16 %v852, %v848
    %v1321 = vpack.c.b16 %v853, %v849
    %v1322 = vpack.c.b16 %v858, %v854
    %v1323 = vpack.c.b16 %v859, %v855
    %v1324 = vpack.c.b16 %v860, %v856
    %v1325 = vpack.c.b16 %v861, %v857
    %v1326 = vpack.c.b16 %v866, %v862
    %v1327 = vpack.c.b16 %v867, %v863
    %v1328 = vpack.c.b16 %v868, %v864
    %v1329 = vpack.c.b16 %v869, %v865
    %v1330 = vpack.c.b16 %v874, %v870
    %v1331 = vpack.c.b16 %v875, %v871
    %v1332 = vpack.c.b16 %v876, %v872
    %v1333 = vpack.c.b16 %v877, %v873
    %v1334 = vpack.c.b16 %v882, %v878
    %v1335 = vpack.c.b16 %v883, %v879
    %v1336 = vpack.c.b16 %v884, %v880
    %v1337 = vpack.c.b16 %v885, %v881
    %v1338 = vpack.c.b16 %v890, %v886
    %v1339 = vpack.c.b16 %v891, %v887
    %v1340 = vpack.c.b16 %v892, %v888
    %v1341 = vpack.c.b16 %v893, %v889
    %v1342 = vpack.c.b16 %v898, %v894
    %v1343 = vpack.c.b16 %v899, %v895
    %v1344 = vpack.c.b16 %v900, %v896
    %v1345 = vpack.c.b16 %v901, %v897
    %v1346 = vpack.c.b16 %v906, %v902
    %v1347 = vpack.c.b16 %v907, %v903
    %v1348 = vpack.c.b16 %v908, %v904
    %v1349 = vpack.c.b16 %v909, %v905
    %v1350 = vpack.c.b16 %v914, %v910
    %v1351 = vpack.c.b16 %v915, %v911
    %v1352 = vpack.c.b16 %v916, %v912
    %v1353 = vpack.c.b16 %v917, %v913
    %v1354 = vpack.c.b16 %v922, %v918
    %v1355 = vpack.c.b16 %v923, %v919
    %v1356 = vpack.c.b16 %v924, %v920
    %v1357 = vpack.c.b16 %v925, %v921
    %v1358 = vpack.c.b16 %v930, %v926
    %v1359 = vpack.c.b16 %v931, %v927
    %v1360 = vpack.c.b16 %v932, %v928
    %v1361 = vpack.c.b16 %v933, %v929
    %v1362 = vpack.c.b16 %v938, %v934
    %v1363 = vpack.c.b16 %v939, %v935
    %v1364 = vpack.c.b16 %v940, %v936
    %v1365 = vpack.c.b16 %v941, %v937
    %v1366 = vpack.c.b16 %v946, %v942
    %v1367 = vpack.c.b16 %v947, %v943
    %v1368 = vpack.c.b16 %v948, %v944
    %v1369 = vpack.c.b16 %v949, %v945
    %v1370 = vpack.c.b16 %v954, %v950
    %v1371 = vpack.c.b16 %v955, %v951
    %v1372 = vpack.c.b16 %v956, %v952
    %v1373 = vpack.c.b16 %v957, %v953
    %v1374 = vpack.c.b16 %v962, %v958
    %v1375 = vpack.c.b16 %v963, %v959
    %v1376 = vpack.c.b16 %v964, %v960
    %v1377 = vpack.c.b16 %v965, %v961
    %v1378 = vpack.c.b16 %v970, %v966
    %v1379 = vpack.c.b16 %v971, %v967
    %v1380 = vpack.c.b16 %v972, %v968
    %v1381 = vpack.c.b16 %v973, %v969
    %v1382 = vpack.c.b16 %v978, %v974
    %v1383 = vpack.c.b16 %v979, %v975
    %v1384 = vpack.c.b16 %v980, %v976
    %v1385 = vpack.c.b16 %v981, %v977
    %v1386 = vpack.c.b16 %v986, %v982
    %v1387 = vpack.c.b16 %v987, %v983
    %v1388 = vpack.c.b16 %v988, %v984
    %v1389 = vpack.c.b16 %v989, %v985
    %v1390 = vpack.c.b16 %v994, %v990
    %v1391 = vpack.c.b16 %v995, %v991
    %v1392 = vpack.c.b16 %v996, %v992
    %v1393 = vpack.c.b16 %v997, %v993
    %v1394 = vpack.c.b16 %v1002, %v998
    %v1395 = vpack.c.b16 %v1003, %v999
    %v1396 = vpack.c.b16 %v1004, %v1000
    %v1397 = vpack.c.b16 %v1005, %v1001
    %v1398 = vpack.c.b16 %v1010, %v1006
    %v1399 = vpack.c.b16 %v1011, %v1007
    %v1400 = vpack.c.b16 %v1012, %v1008
    %v1401 = vpack.c.b16 %v1013, %v1009
    %v1402 = vpack.c.b16 %v1018, %v1014
    %v1403 = vpack.c.b16 %v1019, %v1015
    %v1404 = vpack.c.b16 %v1020, %v1016
    %v1405 = vpack.c.b16 %v1021, %v1017
    %v1406 = vpack.c.b16 %v1026, %v1022
    %v1407 = vpack.c.b16 %v1027, %v1023
    %v1408 = vpack.c.b16 %v1028, %v1024
    %v1409 = vpack.c.b16 %v1029, %v1025
    %v1410 = vpack.c.b16 %v1034, %v1030
    %v1411 = vpack.c.b16 %v1035, %v1031
    %v1412 = vpack.c.b16 %v1036, %v1032
    %v1413 = vpack.c.b16 %v1037, %v1033
    %v1414 = vpack.c.b16 %v1042, %v1038
    %v1415 = vpack.c.b16 %v1043, %v1039
    %v1416 = vpack.c.b16 %v1044, %v1040
    %v1417 = vpack.c.b16 %v1045, %v1041
    %v1418 = vpack.c.b16 %v1050, %v1046
    %v1419 = vpack.c.b16 %v1051, %v1047
    %v1420 = vpack.c.b16 %v1052, %v1048
    %v1421 = vpack.c.b16 %v1053, %v1049
    %v1422 = vpack.c.b16 %v1058, %v1054
    %v1423 = vpack.c.b16 %v1059, %v1055
    %v1424 = vpack.c.b16 %v1060, %v1056
    %v1425 = vpack.c.b16 %v1061, %v1057
    %v1426 = vpack.c.b16 %v1066, %v1062
    %v1427 = vpack.c.b16 %v1067, %v1063
    %v1428 = vpack.c.b16 %v1068, %v1064
    %v1429 = vpack.c.b16 %v1069, %v1065
    %v1430 = vpack.c.b16 %v1074, %v1070
    %v1431 = vpack.c.b16 %v1075, %v1071
    %v1432 = vpack.c.b16 %v1076, %v1072
    %v1433 = vpack.c.b16 %v1077, %v1073
    %v1434 = vpack.c.b16 %v1082, %v1078
    %v1435 = vpack.c.b16 %v1083, %v1079
    %v1436 = vpack.c.b16 %v1084, %v1080
    %v1437 = vpack.c.b16 %v1085, %v1081
    %v1438 = vpack.c.b16 %v1090, %v1086
    %v1439 = vpack.c.b16 %v1091, %v1087
    %v1440 = vpack.c.b16 %v1092, %v1088
    %v1441 = vpack.c.b16 %v1093, %v1089
    %v1442 = vpack.c.b16 %v1098, %v1094
    %v1443 = vpack.c.b16 %v1099, %v1095
    %v1444 = vpack.c.b16 %v1100, %v1096
    %v1445 = vpack.c.b16 %v1101, %v1097
    %v1446 = vpack.c.b16 %v1106, %v1102
    %v1447 = vpack.c.b16 %v1107, %v1103
    %v1448 = vpack.c.b16 %v1108, %v1104
    %v1449 = vpack.c.b16 %v1109, %v1105
    %v1450 = vpack.c.b16 %v1114, %v1110
    %v1451 = vpack.c.b16 %v1115, %v1111
    %v1452 = vpack.c.b16 %v1116, %v1112
    %v1453 = vpack.c.b16 %v1117, %v1113
    %v1454 = vpack.c.b16 %v1122, %v1118
    %v1455 = vpack.c.b16 %v1123, %v1119
    %v1456 = vpack.c.b16 %v1124, %v1120
    %v1457 = vpack.c.b16 %v1125, %v1121
    %v1458 = vpack.c.b16 %v1130, %v1126
    %v1459 = vpack.c.b16 %v1131, %v1127
    %v1460 = vpack.c.b16 %v1132, %v1128
    %v1461 = vpack.c.b16 %v1133, %v1129
    %v1462 = vpack.c.b16 %v1138, %v1134
    %v1463 = vpack.c.b16 %v1139, %v1135
    %v1464 = vpack.c.b16 %v1140, %v1136
    %v1465 = vpack.c.b16 %v1141, %v1137
    %v1466 = vpack.c.b16 %v1146, %v1142
    %v1467 = vpack.c.b16 %v1147, %v1143
    %v1468 = vpack.c.b16 %v1148, %v1144
    %v1469 = vpack.c.b16 %v1149, %v1145
    %v1470 = vpack.c.b16 %v1154, %v1150
    %v1471 = vpack.c.b16 %v1155, %v1151
    %v1472 = vpack.c.b16 %v1156, %v1152
    %v1473 = vpack.c.b16 %v1157, %v1153
    %v1474 = vpack.c.b16 %v1162, %v1158
    %v1475 = vpack.c.b16 %v1163, %v1159
    %v1476 = vpack.c.b16 %v1164, %v1160
    %v1477 = vpack.c.b16 %v1165, %v1161
    %v1478 = vpack.c.b16 %v1170, %v1166
    %v1479 = vpack.c.b16 %v1171, %v1167
    %v1480 = vpack.c.b16 %v1172, %v1168
    %v1481 = vpack.c.b16 %v1173, %v1169
    %v1482 = vpack.c.b16 %v1178, %v1174
    %v1483 = vpack.c.b16 %v1179, %v1175
    %v1484 = vpack.c.b16 %v1180, %v1176
    %v1485 = vpack.c.b16 %v1181, %v1177
    %v1486 = vpack.c.b16 %v1186, %v1182
    %v1487 = vpack.c.b16 %v1187, %v1183
    %v1488 = vpack.c.b16 %v1188, %v1184
    %v1489 = vpack.c.b16 %v1189, %v1185
    %v1490 = vpack.c.b16 %v1194, %v1190
    %v1491 = vpack.c.b16 %v1195, %v1191
    %v1492 = vpack.c.b16 %v1196, %v1192
    %v1493 = vpack.c.b16 %v1197, %v1193
    %v1494 = vpack.c.b16 %v1202, %v1198
    %v1495 = vpack.c.b16 %v1203, %v1199
    %v1496 = vpack.c.b16 %v1204, %v1200
    %v1497 = vpack.c.b16 %v1205, %v1201
    %v1498 = vpack.c.b16 %v1210, %v1206
    %v1499 = vpack.c.b16 %v1211, %v1207
    %v1500 = vpack.c.b16 %v1212, %v1208
    %v1501 = vpack.c.b16 %v1213, %v1209
    %v1502 = vpack.c.b16 %v1218, %v1214
    %v1503 = vpack.c.b16 %v1219, %v1215
    %v1504 = vpack.c.b16 %v1220, %v1216
    %v1505 = vpack.c.b16 %v1221, %v1217
    %v1506 = vpack.c.b16 %v1226, %v1222
    %v1507 = vpack.c.b16 %v1227, %v1223
    %v1508 = vpack.c.b16 %v1228, %v1224
    %v1509 = vpack.c.b16 %v1229, %v1225
    %v1510 = vpack.c.b16 %v1234, %v1230
    %v1511 = vpack.c.b16 %v1235, %v1231
    %v1512 = vpack.c.b16 %v1236, %v1232
    %v1513 = vpack.c.b16 %v1237, %v1233
    %vm1786 = vcmask 621568
    %v1788 = vsel %vm1786, %v111, 0
    %vm1790 = vcmask 1045504
    %v1792 = vsel %vm1790, %v1510, 0
    %v1795 = vsel %vm1790, %v1511, 0
    %v1798 = vsel %vm1790, %v1512, 0
    %v1801 = vsel %vm1790, %v1513, 0
    %1803 = vmatprep.subr.bf16.mxu0 %v1239
    %1804 = vmatpush1.bf16.msra.mxu0 %v1238
    %1805 = vmatprep.subr.bf16.mxu0 %v1243
    %1806 = vmatpush1.bf16.msra.mxu0 %v1242
    %1807 = vmatprep.subr.bf16.mxu0 %v1247
    %1808 = vmatpush1.bf16.msra.mxu0 %v1246
    %1809 = vmatprep.subr.bf16.mxu0 %v1251
    %1810 = vmatpush1.bf16.msra.mxu0 %v1250
    %1811 = vmatprep.subr.bf16.mxu0 %v1255
    %1812 = vmatpush1.bf16.msra.mxu0 %v1254
    %1813 = vmatprep.subr.bf16.mxu0 %v1259
    %1814 = vmatpush1.bf16.msra.mxu0 %v1258
    %1815 = vmatprep.subr.bf16.mxu0 %v1263
    %1816 = vmatpush1.bf16.msra.mxu0 %v1262
    %1817 = vmatprep.subr.bf16.mxu0 %v1267
    %1818 = vmatpush1.bf16.msra.mxu0 %v1266
    %1819 = vmatprep.subr.bf16.mxu0 %v1271
    %1820 = vmatpush1.bf16.msra.mxu0 %v1270
    %1821 = vmatprep.subr.bf16.mxu0 %v1275
    %1822 = vmatpush1.bf16.msra.mxu0 %v1274
    %1823 = vmatprep.subr.bf16.mxu0 %v1279
    %1824 = vmatpush1.bf16.msra.mxu0 %v1278
    %1825 = vmatprep.subr.bf16.mxu0 %v1283
    %1826 = vmatpush1.bf16.msra.mxu0 %v1282
    %1827 = vmatprep.subr.bf16.mxu0 %v1287
    %1828 = vmatpush1.bf16.msra.mxu0 %v1286
    %1829 = vmatprep.subr.bf16.mxu0 %v1291
    %1830 = vmatpush1.bf16.msra.mxu0 %v1290
    %1831 = vmatprep.subr.bf16.mxu0 %v1295
    %1832 = vmatpush1.bf16.msra.mxu0 %v1294
    %1833 = vmatprep.subr.bf16.mxu0 %v1299
    %1834 = vmatpush1.bf16.msra.mxu0 %v1298
    %1835 = vmatprep.mubr.bf16.mxu0 %v104
    %1836 = vmatmul.mubr.bf16.gmra.mrb[0].mxu0 %v103
    %v1837 = vpop.f32.mrb[0].mxu0
    %v1838 = vadd.f32 %v393, %v1837
    %v1839 = vpop.f32.mrb[0].mxu0
    %v1840 = vadd.f32 %v397, %v1839
    %v1841 = vpop.f32.mrb[0].mxu0
    %v1842 = vadd.f32 %v393, %v1841
    %v1843 = vpop.f32.mrb[0].mxu0
    %v1844 = vadd.f32 %v397, %v1843
    %1845 = vdwg.mxu0
    %1846 = vmatprep.subr.bf16.mxu0 %v1303
    %1847 = vmatpush1.bf16.msra.mxu0 %v1302
    %1848 = vmatprep.subr.bf16.mxu0 %v1307
    %1849 = vmatpush1.bf16.msra.mxu0 %v1306
    %1850 = vmatprep.subr.bf16.mxu0 %v1311
    %1851 = vmatpush1.bf16.msra.mxu0 %v1310
    %1852 = vmatprep.subr.bf16.mxu0 %v1315
    %1853 = vmatpush1.bf16.msra.mxu0 %v1314
    %1854 = vmatprep.subr.bf16.mxu0 %v1319
    %1855 = vmatpush1.bf16.msra.mxu0 %v1318
    %1856 = vmatprep.subr.bf16.mxu0 %v1323
    %1857 = vmatpush1.bf16.msra.mxu0 %v1322
    %1858 = vmatprep.subr.bf16.mxu0 %v1327
    %1859 = vmatpush1.bf16.msra.mxu0 %v1326
    %1860 = vmatprep.subr.bf16.mxu0 %v1331
    %1861 = vmatpush1.bf16.msra.mxu0 %v1330
    %1862 = vmatprep.subr.bf16.mxu0 %v1335
    %1863 = vmatpush1.bf16.msra.mxu0 %v1334
    %1864 = vmatprep.subr.bf16.mxu0 %v1339
    %1865 = vmatpush1.bf16.msra.mxu0 %v1338
    %1866 = vmatprep.subr.bf16.mxu0 %v1343
    %1867 = vmatpush1.bf16.msra.mxu0 %v1342
    %1868 = vmatprep.subr.bf16.mxu0 %v1347
    %1869 = vmatpush1.bf16.msra.mxu0 %v1346
    %1870 = vmatprep.subr.bf16.mxu0 %v1351
    %1871 = vmatpush1.bf16.msra.mxu0 %v1350
    %1872 = vmatprep.subr.bf16.mxu0 %v1355
    %1873 = vmatpush1.bf16.msra.mxu0 %v1354
    %1874 = vmatprep.subr.bf16.mxu0 %v1359
    %1875 = vmatpush1.bf16.msra.mxu0 %v1358
    %1876 = vmatprep.subr.bf16.mxu0 %v1363
    %1877 = vmatpush1.bf16.msra.mxu0 %v1362
    %1878 = vmatprep.mubr.bf16.mxu0 %v106
    %1879 = vmatmul.mubr.bf16.gmra.mrb[0].mxu0 %v105
    %v1880 = vpop.f32.mrb[0].mxu0
    %v1881 = vadd.f32 %v1838, %v1880
    %v1882 = vpop.f32.mrb[0].mxu0
    %v1883 = vadd.f32 %v1840, %v1882
    %v1884 = vpop.f32.mrb[0].mxu0
    %v1885 = vadd.f32 %v1842, %v1884
    %v1886 = vpop.f32.mrb[0].mxu0
    %v1887 = vadd.f32 %v1844, %v1886
    %1888 = vdwg.mxu0
    %1889 = vmatprep.subr.bf16.mxu0 %v1367
    %1890 = vmatpush1.bf16.msra.mxu0 %v1366
    %1891 = vmatprep.subr.bf16.mxu0 %v1371
    %1892 = vmatpush1.bf16.msra.mxu0 %v1370
    %1893 = vmatprep.subr.bf16.mxu0 %v1375
    %1894 = vmatpush1.bf16.msra.mxu0 %v1374
    %1895 = vmatprep.subr.bf16.mxu0 %v1379
    %1896 = vmatpush1.bf16.msra.mxu0 %v1378
    %1897 = vmatprep.subr.bf16.mxu0 %v1383
    %1898 = vmatpush1.bf16.msra.mxu0 %v1382
    %1899 = vmatprep.subr.bf16.mxu0 %v1387
    %1900 = vmatpush1.bf16.msra.mxu0 %v1386
    %1901 = vmatprep.subr.bf16.mxu0 %v1391
    %1902 = vmatpush1.bf16.msra.mxu0 %v1390
    %1903 = vmatprep.subr.bf16.mxu0 %v1395
    %1904 = vmatpush1.bf16.msra.mxu0 %v1394
    %1905 = vmatprep.subr.bf16.mxu0 %v1399
    %1906 = vmatpush1.bf16.msra.mxu0 %v1398
    %1907 = vmatprep.subr.bf16.mxu0 %v1403
    %1908 = vmatpush1.bf16.msra.mxu0 %v1402
    %1909 = vmatprep.subr.bf16.mxu0 %v1407
    %1910 = vmatpush1.bf16.msra.mxu0 %v1406
    %1911 = vmatprep.subr.bf16.mxu0 %v1411
    %1912 = vmatpush1.bf16.msra.mxu0 %v1410
    %1913 = vmatprep.subr.bf16.mxu0 %v1415
    %1914 = vmatpush1.bf16.msra.mxu0 %v1414
    %1915 = vmatprep.subr.bf16.mxu0 %v1419
    %1916 = vmatpush1.bf16.msra.mxu0 %v1418
    %1917 = vmatprep.subr.bf16.mxu0 %v1423
    %1918 = vmatpush1.bf16.msra.mxu0 %v1422
    %1919 = vmatprep.subr.bf16.mxu0 %v1427
    %1920 = vmatpush1.bf16.msra.mxu0 %v1426
    %1921 = vmatprep.mubr.bf16.mxu0 %v108
    %1922 = vmatmul.mubr.bf16.gmra.mrb[0].mxu0 %v107
    %v1923 = vpop.f32.mrb[0].mxu0
    %v1924 = vadd.f32 %v1881, %v1923
    %v1925 = vpop.f32.mrb[0].mxu0
    %v1926 = vadd.f32 %v1883, %v1925
    %v1927 = vpop.f32.mrb[0].mxu0
    %v1928 = vadd.f32 %v1885, %v1927
    %v1929 = vpop.f32.mrb[0].mxu0
    %v1930 = vadd.f32 %v1887, %v1929
    %1931 = vdwg.mxu0
    %1932 = vmatprep.subr.bf16.mxu0 %v1431
    %1933 = vmatpush1.bf16.msra.mxu0 %v1430
    %1934 = vmatprep.subr.bf16.mxu0 %v1435
    %1935 = vmatpush1.bf16.msra.mxu0 %v1434
    %1936 = vmatprep.subr.bf16.mxu0 %v1439
    %1937 = vmatpush1.bf16.msra.mxu0 %v1438
    %1938 = vmatprep.subr.bf16.mxu0 %v1443
    %1939 = vmatpush1.bf16.msra.mxu0 %v1442
    %1940 = vmatprep.subr.bf16.mxu0 %v1447
    %1941 = vmatpush1.bf16.msra.mxu0 %v1446
    %1942 = vmatprep.subr.bf16.mxu0 %v1451
    %1943 = vmatpush1.bf16.msra.mxu0 %v1450
    %1944 = vmatprep.subr.bf16.mxu0 %v1455
    %1945 = vmatpush1.bf16.msra.mxu0 %v1454
    %1946 = vmatprep.subr.bf16.mxu0 %v1459
    %1947 = vmatpush1.bf16.msra.mxu0 %v1458
    %1948 = vmatprep.subr.bf16.mxu0 %v1463
    %1949 = vmatpush1.bf16.msra.mxu0 %v1462
    %1950 = vmatprep.subr.bf16.mxu0 %v1467
    %1951 = vmatpush1.bf16.msra.mxu0 %v1466
    %1952 = vmatprep.subr.bf16.mxu0 %v1471
    %1953 = vmatpush1.bf16.msra.mxu0 %v1470
    %1954 = vmatprep.subr.bf16.mxu0 %v1475
    %1955 = vmatpush1.bf16.msra.mxu0 %v1474
    %1956 = vmatprep.subr.bf16.mxu0 %v1479
    %1957 = vmatpush1.bf16.msra.mxu0 %v1478
    %1958 = vmatprep.subr.bf16.mxu0 %v1483
    %1959 = vmatpush1.bf16.msra.mxu0 %v1482
    %1960 = vmatprep.subr.bf16.mxu0 %v1487
    %1961 = vmatpush1.bf16.msra.mxu0 %v1486
    %1962 = vmatprep.subr.bf16.mxu0 %v1491
    %1963 = vmatpush1.bf16.msra.mxu0 %v1490
    %1964 = vmatprep.mubr.bf16.mxu0 %v110
    %1965 = vmatmul.mubr.bf16.gmra.mrb[0].mxu0 %v109
    %v1966 = vpop.f32.mrb[0].mxu0
    %v1967 = vadd.f32 %v1924, %v1966
    %v1968 = vpop.f32.mrb[0].mxu0
    %v1969 = vadd.f32 %v1926, %v1968
    %v1970 = vpop.f32.mrb[0].mxu0
    %v1971 = vadd.f32 %v1928, %v1970
    %v1972 = vpop.f32.mrb[0].mxu0
    %v1973 = vadd.f32 %v1930, %v1972
    %1974 = vdwg.mxu0
    %1975 = vmatprep.subr.bf16.mxu0 %v1495
    %1976 = vmatpush1.bf16.msra.mxu0 %v1494
    %1977 = vmatprep.subr.bf16.mxu0 %v1499
    %1978 = vmatpush1.bf16.msra.mxu0 %v1498
    %1979 = vmatprep.subr.bf16.mxu0 %v1503
    %1980 = vmatpush1.bf16.msra.mxu0 %v1502
    %1981 = vmatprep.subr.bf16.mxu0 %v1507
    %1982 = vmatpush1.bf16.msra.mxu0 %v1506
    %1983 = vmatprep.subr.bf16.mxu0 %v1795
    %1984 = vmatpush1.bf16.msra.mxu0 %v1792
    %1985 = vmatprep.subr.bf16.mxu0 0
    %1986 = vmatpush1.bf16.msra.mxu0 0
    %1987 = vmatprep.subr.bf16.mxu0 0
    %1988 = vmatpush1.bf16.msra.mxu0 0
    %1989 = vmatprep.subr.bf16.mxu0 0
    %1990 = vmatpush1.bf16.msra.mxu0 0
    %1991 = vmatprep.subr.bf16.mxu0 0
    %1992 = vmatpush1.bf16.msra.mxu0 0
    %1993 = vmatprep.subr.bf16.mxu0 0
    %1994 = vmatpush1.bf16.msra.mxu0 0
    %1995 = vmatprep.subr.bf16.mxu0 0
    %1996 = vmatpush1.bf16.msra.mxu0 0
    %1997 = vmatprep.subr.bf16.mxu0 0
    %1998 = vmatpush1.bf16.msra.mxu0 0
    %1999 = vmatprep.subr.bf16.mxu0 0
    %2000 = vmatpush1.bf16.msra.mxu0 0
    %2001 = vmatprep.subr.bf16.mxu0 0
    %2002 = vmatpush1.bf16.msra.mxu0 0
    %2003 = vmatprep.subr.bf16.mxu0 0
    %2004 = vmatpush1.bf16.msra.mxu0 0
    %2005 = vmatprep.subr.bf16.mxu0 0
    %2006 = vmatpush1.bf16.msra.mxu0 0
    %2007 = vmatprep.mubr.bf16.mxu0 0
    %2008 = vmatmul.mubr.bf16.gmra.mrb[0].mxu0 %v1788
    %v2009 = vpop.f32.mrb[0].mxu0
    %v2010 = vadd.f32 %v1967, %v2009
    %v2011 = vpop.f32.mrb[0].mxu0
    %v2012 = vadd.f32 %v1969, %v2011
    %v2013 = vpop.f32.mrb[0].mxu0
    %v2014 = vadd.f32 %v1971, %v2013
    %v2015 = vpop.f32.mrb[0].mxu0
    %v2016 = vadd.f32 %v1973, %v2015
    %2017 = vdwg.mxu0
    %2018 = vmatprep.subr.bf16.mxu0 %v1241
    %2019 = vmatpush1.bf16.msra.mxu0 %v1240
    %2020 = vmatprep.subr.bf16.mxu0 %v1245
    %2021 = vmatpush1.bf16.msra.mxu0 %v1244
    %2022 = vmatprep.subr.bf16.mxu0 %v1249
    %2023 = vmatpush1.bf16.msra.mxu0 %v1248
    %2024 = vmatprep.subr.bf16.mxu0 %v1253
    %2025 = vmatpush1.bf16.msra.mxu0 %v1252
    %2026 = vmatprep.subr.bf16.mxu0 %v1257
    %2027 = vmatpush1.bf16.msra.mxu0 %v1256
    %2028 = vmatprep.subr.bf16.mxu0 %v1261
    %2029 = vmatpush1.bf16.msra.mxu0 %v1260
    %2030 = vmatprep.subr.bf16.mxu0 %v1265
    %2031 = vmatpush1.bf16.msra.mxu0 %v1264
    %2032 = vmatprep.subr.bf16.mxu0 %v1269
    %2033 = vmatpush1.bf16.msra.mxu0 %v1268
    %2034 = vmatprep.subr.bf16.mxu0 %v1273
    %2035 = vmatpush1.bf16.msra.mxu0 %v1272
    %2036 = vmatprep.subr.bf16.mxu0 %v1277
    %2037 = vmatpush1.bf16.msra.mxu0 %v1276
    %2038 = vmatprep.subr.bf16.mxu0 %v1281
    %2039 = vmatpush1.bf16.msra.mxu0 %v1280
    %2040 = vmatprep.subr.bf16.mxu0 %v1285
    %2041 = vmatpush1.bf16.msra.mxu0 %v1284
    %2042 = vmatprep.subr.bf16.mxu0 %v1289
    %2043 = vmatpush1.bf16.msra.mxu0 %v1288
    %2044 = vmatprep.subr.bf16.mxu0 %v1293
    %2045 = vmatpush1.bf16.msra.mxu0 %v1292
    %2046 = vmatprep.subr.bf16.mxu0 %v1297
    %2047 = vmatpush1.bf16.msra.mxu0 %v1296
    %2048 = vmatprep.subr.bf16.mxu0 %v1301
    %2049 = vmatpush1.bf16.msra.mxu0 %v1300
    %2050 = vmatprep.mubr.bf16.mxu0 %v104
    %2051 = vmatmul.mubr.bf16.gmra.mrb[0].mxu0 %v103
    %v2052 = vpop.f32.mrb[0].mxu0
    %v2053 = vadd.f32 %v401, %v2052
    %v2054 = vpop.f32.mrb[0].mxu0
    %v2055 = vadd.f32 %v405, %v2054
    %v2056 = vpop.f32.mrb[0].mxu0
    %v2057 = vadd.f32 %v401, %v2056
    %v2058 = vpop.f32.mrb[0].mxu0
    %v2059 = vadd.f32 %v405, %v2058
    %2060 = vdwg.mxu0
    %2061 = vmatprep.subr.bf16.mxu0 %v1305
    %2062 = vmatpush1.bf16.msra.mxu0 %v1304
    %2063 = vmatprep.subr.bf16.mxu0 %v1309
    %2064 = vmatpush1.bf16.msra.mxu0 %v1308
    %2065 = vmatprep.subr.bf16.mxu0 %v1313
    %2066 = vmatpush1.bf16.msra.mxu0 %v1312
    %2067 = vmatprep.subr.bf16.mxu0 %v1317
    %2068 = vmatpush1.bf16.msra.mxu0 %v1316
    %2069 = vmatprep.subr.bf16.mxu0 %v1321
    %2070 = vmatpush1.bf16.msra.mxu0 %v1320
    %2071 = vmatprep.subr.bf16.mxu0 %v1325
    %2072 = vmatpush1.bf16.msra.mxu0 %v1324
    %2073 = vmatprep.subr.bf16.mxu0 %v1329
    %2074 = vmatpush1.bf16.msra.mxu0 %v1328
    %2075 = vmatprep.subr.bf16.mxu0 %v1333
    %2076 = vmatpush1.bf16.msra.mxu0 %v1332
    %2077 = vmatprep.subr.bf16.mxu0 %v1337
    %2078 = vmatpush1.bf16.msra.mxu0 %v1336
    %2079 = vmatprep.subr.bf16.mxu0 %v1341
    %2080 = vmatpush1.bf16.msra.mxu0 %v1340
    %2081 = vmatprep.subr.bf16.mxu0 %v1345
    %2082 = vmatpush1.bf16.msra.mxu0 %v1344
    %2083 = vmatprep.subr.bf16.mxu0 %v1349
    %2084 = vmatpush1.bf16.msra.mxu0 %v1348
    %2085 = vmatprep.subr.bf16.mxu0 %v1353
    %2086 = vmatpush1.bf16.msra.mxu0 %v1352
    %2087 = vmatprep.subr.bf16.mxu0 %v1357
    %2088 = vmatpush1.bf16.msra.mxu0 %v1356
    %2089 = vmatprep.subr.bf16.mxu0 %v1361
    %2090 = vmatpush1.bf16.msra.mxu0 %v1360
    %2091 = vmatprep.subr.bf16.mxu0 %v1365
    %2092 = vmatpush1.bf16.msra.mxu0 %v1364
    %2093 = vmatprep.mubr.bf16.mxu0 %v106
    %2094 = vmatmul.mubr.bf16.gmra.mrb[0].mxu0 %v105
    %v2095 = vpop.f32.mrb[0].mxu0
    %v2096 = vadd.f32 %v2053, %v2095
    %v2097 = vpop.f32.mrb[0].mxu0
    %v2098 = vadd.f32 %v2055, %v2097
    %v2099 = vpop.f32.mrb[0].mxu0
    %v2100 = vadd.f32 %v2057, %v2099
    %v2101 = vpop.f32.mrb[0].mxu0
    %v2102 = vadd.f32 %v2059, %v2101
    %2103 = vdwg.mxu0
    %2104 = vmatprep.subr.bf16.mxu0 %v1369
    %2105 = vmatpush1.bf16.msra.mxu0 %v1368
    %2106 = vmatprep.subr.bf16.mxu0 %v1373
    %2107 = vmatpush1.bf16.msra.mxu0 %v1372
    %2108 = vmatprep.subr.bf16.mxu0 %v1377
    %2109 = vmatpush1.bf16.msra.mxu0 %v1376
    %2110 = vmatprep.subr.bf16.mxu0 %v1381
    %2111 = vmatpush1.bf16.msra.mxu0 %v1380
    %2112 = vmatprep.subr.bf16.mxu0 %v1385
    %2113 = vmatpush1.bf16.msra.mxu0 %v1384
    %2114 = vmatprep.subr.bf16.mxu0 %v1389
    %2115 = vmatpush1.bf16.msra.mxu0 %v1388
    %2116 = vmatprep.subr.bf16.mxu0 %v1393
    %2117 = vmatpush1.bf16.msra.mxu0 %v1392
    %2118 = vmatprep.subr.bf16.mxu0 %v1397
    %2119 = vmatpush1.bf16.msra.mxu0 %v1396
    %2120 = vmatprep.subr.bf16.mxu0 %v1401
    %2121 = vmatpush1.bf16.msra.mxu0 %v1400
    %2122 = vmatprep.subr.bf16.mxu0 %v1405
    %2123 = vmatpush1.bf16.msra.mxu0 %v1404
    %2124 = vmatprep.subr.bf16.mxu0 %v1409
    %2125 = vmatpush1.bf16.msra.mxu0 %v1408
    %2126 = vmatprep.subr.bf16.mxu0 %v1413
    %2127 = vmatpush1.bf16.msra.mxu0 %v1412
    %2128 = vmatprep.subr.bf16.mxu0 %v1417
    %2129 = vmatpush1.bf16.msra.mxu0 %v1416
    %2130 = vmatprep.subr.bf16.mxu0 %v1421
    %2131 = vmatpush1.bf16.msra.mxu0 %v1420
    %2132 = vmatprep.subr.bf16.mxu0 %v1425
    %2133 = vmatpush1.bf16.msra.mxu0 %v1424
    %2134 = vmatprep.subr.bf16.mxu0 %v1429
    %2135 = vmatpush1.bf16.msra.mxu0 %v1428
    %2136 = vmatprep.mubr.bf16.mxu0 %v108
    %2137 = vmatmul.mubr.bf16.gmra.mrb[0].mxu0 %v107
    %v2138 = vpop.f32.mrb[0].mxu0
    %v2139 = vadd.f32 %v2096, %v2138
    %v2140 = vpop.f32.mrb[0].mxu0
    %v2141 = vadd.f32 %v2098, %v2140
    %v2142 = vpop.f32.mrb[0].mxu0
    %v2143 = vadd.f32 %v2100, %v2142
    %v2144 = vpop.f32.mrb[0].mxu0
    %v2145 = vadd.f32 %v2102, %v2144
    %2146 = vdwg.mxu0
    %2147 = vmatprep.subr.bf16.mxu0 %v1433
    %2148 = vmatpush1.bf16.msra.mxu0 %v1432
    %2149 = vmatprep.subr.bf16.mxu0 %v1437
    %2150 = vmatpush1.bf16.msra.mxu0 %v1436
    %2151 = vmatprep.subr.bf16.mxu0 %v1441
    %2152 = vmatpush1.bf16.msra.mxu0 %v1440
    %2153 = vmatprep.subr.bf16.mxu0 %v1445
    %2154 = vmatpush1.bf16.msra.mxu0 %v1444
    %2155 = vmatprep.subr.bf16.mxu0 %v1449
    %2156 = vmatpush1.bf16.msra.mxu0 %v1448
    %2157 = vmatprep.subr.bf16.mxu0 %v1453
    %2158 = vmatpush1.bf16.msra.mxu0 %v1452
    %2159 = vmatprep.subr.bf16.mxu0 %v1457
    %2160 = vmatpush1.bf16.msra.mxu0 %v1456
    %2161 = vmatprep.subr.bf16.mxu0 %v1461
    %2162 = vmatpush1.bf16.msra.mxu0 %v1460
    %2163 = vmatprep.subr.bf16.mxu0 %v1465
    %2164 = vmatpush1.bf16.msra.mxu0 %v1464
    %2165 = vmatprep.subr.bf16.mxu0 %v1469
    %2166 = vmatpush1.bf16.msra.mxu0 %v1468
    %2167 = vmatprep.subr.bf16.mxu0 %v1473
    %2168 = vmatpush1.bf16.msra.mxu0 %v1472
    %2169 = vmatprep.subr.bf16.mxu0 %v1477
    %2170 = vmatpush1.bf16.msra.mxu0 %v1476
    %2171 = vmatprep.subr.bf16.mxu0 %v1481
    %2172 = vmatpush1.bf16.msra.mxu0 %v1480
    %2173 = vmatprep.subr.bf16.mxu0 %v1485
    %2174 = vmatpush1.bf16.msra.mxu0 %v1484
    %2175 = vmatprep.subr.bf16.mxu0 %v1489
    %2176 = vmatpush1.bf16.msra.mxu0 %v1488
    %2177 = vmatprep.subr.bf16.mxu0 %v1493
    %2178 = vmatpush1.bf16.msra.mxu0 %v1492
    %2179 = vmatprep.mubr.bf16.mxu0 %v110
    %2180 = vmatmul.mubr.bf16.gmra.mrb[0].mxu0 %v109
    %v2181 = vpop.f32.mrb[0].mxu0
    %v2182 = vadd.f32 %v2139, %v2181
    %v2183 = vpop.f32.mrb[0].mxu0
    %v2184 = vadd.f32 %v2141, %v2183
    %v2185 = vpop.f32.mrb[0].mxu0
    %v2186 = vadd.f32 %v2143, %v2185
    %v2187 = vpop.f32.mrb[0].mxu0
    %v2188 = vadd.f32 %v2145, %v2187
    %2189 = vdwg.mxu0
    %2190 = vmatprep.subr.bf16.mxu0 %v1497
    %2191 = vmatpush1.bf16.msra.mxu0 %v1496
    %2192 = vmatprep.subr.bf16.mxu0 %v1501
    %2193 = vmatpush1.bf16.msra.mxu0 %v1500
    %2194 = vmatprep.subr.bf16.mxu0 %v1505
    %2195 = vmatpush1.bf16.msra.mxu0 %v1504
    %2196 = vmatprep.subr.bf16.mxu0 %v1509
    %2197 = vmatpush1.bf16.msra.mxu0 %v1508
    %2198 = vmatprep.subr.bf16.mxu0 %v1801
    %2199 = vmatpush1.bf16.msra.mxu0 %v1798
    %2200 = vmatprep.subr.bf16.mxu0 0
    %2201 = vmatpush1.bf16.msra.mxu0 0
    %2202 = vmatprep.subr.bf16.mxu0 0
    %2203 = vmatpush1.bf16.msra.mxu0 0
    %2204 = vmatprep.subr.bf16.mxu0 0
    %2205 = vmatpush1.bf16.msra.mxu0 0
    %2206 = vmatprep.subr.bf16.mxu0 0
    %2207 = vmatpush1.bf16.msra.mxu0 0
    %2208 = vmatprep.subr.bf16.mxu0 0
    %2209 = vmatpush1.bf16.msra.mxu0 0
    %2210 = vmatprep.subr.bf16.mxu0 0
    %2211 = vmatpush1.bf16.msra.mxu0 0
    %2212 = vmatprep.subr.bf16.mxu0 0
    %2213 = vmatpush1.bf16.msra.mxu0 0
    %2214 = vmatprep.subr.bf16.mxu0 0
    %2215 = vmatpush1.bf16.msra.mxu0 0
    %2216 = vmatprep.subr.bf16.mxu0 0
    %2217 = vmatpush1.bf16.msra.mxu0 0
    %2218 = vmatprep.subr.bf16.mxu0 0
    %2219 = vmatpush1.bf16.msra.mxu0 0
    %2220 = vmatprep.subr.bf16.mxu0 0
    %2221 = vmatpush1.bf16.msra.mxu0 0
    %2222 = vmatprep.mubr.bf16.mxu0 0
    %2223 = vmatmul.mubr.bf16.gmra.mrb[0].mxu0 %v1788
    %v2224 = vpop.f32.mrb[0].mxu0
    %v2225 = vadd.f32 %v2182, %v2224
    %v2226 = vpop.f32.mrb[0].mxu0
    %v2227 = vadd.f32 %v2184, %v2226
    %v2228 = vpop.f32.mrb[0].mxu0
    %v2229 = vadd.f32 %v2186, %v2228
    %v2230 = vpop.f32.mrb[0].mxu0
    %v2231 = vadd.f32 %v2188, %v2230
    %2232 = vdwg.mxu0
    %v2233 = vmax.f32 %v2010, 0.0
    %v2234 = vmax.f32 %v2012, 0.0
    %v2235 = vmax.f32 %v2225, 0.0
    %v2236 = vmax.f32 %v2227, 0.0
    %v2237 = vmax.f32 %v2014, 0.0
    %v2238 = vmax.f32 %v2016, 0.0
    %v2239 = vmax.f32 %v2229, 0.0
    %v2240 = vmax.f32 %v2231, 0.0
    %v2241 = vpack.c.bf16 %v2237, %v2233
    %v2242 = vpack.c.bf16 %v2238, %v2234
    %v2243 = vpack.c.bf16 %v2239, %v2235
    %v2244 = vpack.c.bf16 %v2240, %v2236
    %v2245 = vld [vmem:[#allocation7] sm:$0xf]
    %v2246 = vld [vmem:[#allocation7 + $0x4] sm:$0xf]
    %v2247 = vld [vmem:[#allocation7 + $0x8] sm:$0xf]
    %v2248 = vld [vmem:[#allocation7 + $0xc] sm:$0xf]
    %v2249 = vld [vmem:[#allocation7 + $0x10] sm:$0xf]
    %v2250 = vld [vmem:[#allocation7 + $0x14] sm:$0xf]
    %v2251 = vld [vmem:[#allocation7 + $0x18] sm:$0xf]
    %v2252 = vld [vmem:[#allocation7 + $0x1c] sm:$0xf]
    %v2253 = vld [vmem:[#allocation7 + $0x20] sm:$0xf]
    %v2254 = vld [vmem:[#allocation7 + $0x24] sm:$0xf]
    %v2255 = vld [vmem:[#allocation7 + $0x28] sm:$0xf]
    %v2256 = vld [vmem:[#allocation7 + $0x2c] sm:$0xf]
    %v2257 = vld [vmem:[#allocation7 + $0x30] sm:$0xf]
    %v2258 = vld [vmem:[#allocation7 + $0x34] sm:$0xf]
    %v2259 = vld [vmem:[#allocation7 + $0x38] sm:$0xf]
    %v2260 = vld [vmem:[#allocation7 + $0x3c] sm:$0xf]
    %v2261 = vld [vmem:[#allocation7 + $0x40] sm:$0xf]
    %v2262 = vld [vmem:[#allocation7 + $0x44] sm:$0xf]
    %v2263 = vld [vmem:[#allocation7 + $0x48] sm:$0xf]
    %v2264 = vld [vmem:[#allocation7 + $0x4c] sm:$0xf]
    %v2265 = vld [vmem:[#allocation7 + $0x50] sm:$0xf]
    %v2266 = vld [vmem:[#allocation7 + $0x54] sm:$0xf]
    %v2267 = vld [vmem:[#allocation7 + $0x58] sm:$0xf]
    %v2268 = vld [vmem:[#allocation7 + $0x5c] sm:$0xf]
    %v2269 = vld [vmem:[#allocation7 + $0x60] sm:$0xf]
    %v2270 = vld [vmem:[#allocation7 + $0x64] sm:$0xf]
    %v2271 = vld [vmem:[#allocation7 + $0x68] sm:$0xf]
    %v2272 = vld [vmem:[#allocation7 + $0x6c] sm:$0xf]
    %v2273 = vld [vmem:[#allocation7 + $0x70] sm:$0xf]
    %v2274 = vld [vmem:[#allocation7 + $0x74] sm:$0xf]
    %v2275 = vld [vmem:[#allocation7 + $0x78] sm:$0xf]
    %v2276 = vld [vmem:[#allocation7 + $0x7c] sm:$0xf]
    %v2277 = vld [vmem:[#allocation7 + $0x80] sm:$0xf]
    %v2278 = vld [vmem:[#allocation7 + $0x84] sm:$0xf]
    %v2279 = vld [vmem:[#allocation7 + $0x88] sm:$0xf]
    %v2280 = vld [vmem:[#allocation7 + $0x8c] sm:$0xf]
    %v2281 = vld [vmem:[#allocation7 + $0x90] sm:$0xf]
    %v2282 = vld [vmem:[#allocation7 + $0x94] sm:$0xf]
    %v2283 = vld [vmem:[#allocation7 + $0x98] sm:$0xf]
    %v2284 = vld [vmem:[#allocation7 + $0x9c] sm:$0xf]
    %v2285 = vld [vmem:[#allocation7 + $0xa0] sm:$0xf]
    %v2286 = vld [vmem:[#allocation7 + $0xa4] sm:$0xf]
    %v2287 = vld [vmem:[#allocation7 + $0xa8] sm:$0xf]
    %v2288 = vld [vmem:[#allocation7 + $0xac] sm:$0xf]
    %v2289 = vld [vmem:[#allocation7 + $0xb0] sm:$0xf]
    %v2290 = vld [vmem:[#allocation7 + $0xb4] sm:$0xf]
    %v2291 = vld [vmem:[#allocation7 + $0xb8] sm:$0xf]
    %v2292 = vld [vmem:[#allocation7 + $0xbc] sm:$0xf]
    %v2293 = vld [vmem:[#allocation7 + $0xc0] sm:$0xf]
    %v2294 = vld [vmem:[#allocation7 + $0xc4] sm:$0xf]
    %v2295 = vld [vmem:[#allocation7 + $0xc8] sm:$0xf]
    %v2296 = vld [vmem:[#allocation7 + $0xcc] sm:$0xf]
    %v2297 = vld [vmem:[#allocation7 + $0xd0] sm:$0xf]
    %v2298 = vld [vmem:[#allocation7 + $0xd4] sm:$0xf]
    %v2299 = vld [vmem:[#allocation7 + $0xd8] sm:$0xf]
    %v2300 = vld [vmem:[#allocation7 + $0xdc] sm:$0xf]
    %v2301 = vld [vmem:[#allocation7 + $0xe0] sm:$0xf]
    %v2302 = vld [vmem:[#allocation7 + $0xe4] sm:$0xf]
    %v2303 = vld [vmem:[#allocation7 + $0xe8] sm:$0xf]
    %v2304 = vld [vmem:[#allocation7 + $0xec] sm:$0xf]
    %v2305 = vld [vmem:[#allocation7 + $0xf0] sm:$0xf]
    %v2306 = vld [vmem:[#allocation7 + $0xf4] sm:$0xf]
    %v2307 = vld [vmem:[#allocation7 + $0xf8] sm:$0xf]
    %v2308 = vld [vmem:[#allocation7 + $0xfc] sm:$0xf]
    %v2309 = vld [vmem:[#allocation9] sm:$0x1]
    %v2311 = vlaneseq
    %v2312 = vshrl.u32 %v2311, 7
    %v2313 = vsub.s32 0, %v2312
    %v2314 = vrot.slane %v2309, %v2313
    %v2380 = vunpack.c.l.b16 %v2245
    %v2381 = vunpack.c.l.b16 %v2246
    %v2382 = vunpack.c.l.b16 %v2247
    %v2383 = vunpack.c.l.b16 %v2248
    %v2384 = vunpack.c.l.b16 %v2249
    %v2385 = vunpack.c.l.b16 %v2250
    %v2386 = vunpack.c.l.b16 %v2251
    %v2387 = vunpack.c.l.b16 %v2252
    %v2388 = vunpack.c.l.b16 %v2253
    %v2389 = vunpack.c.l.b16 %v2254
    %v2390 = vunpack.c.l.b16 %v2255
    %v2391 = vunpack.c.l.b16 %v2256
    %v2392 = vunpack.c.l.b16 %v2257
    %v2393 = vunpack.c.l.b16 %v2258
    %v2394 = vunpack.c.l.b16 %v2259
    %v2395 = vunpack.c.l.b16 %v2260
    %v2396 = vunpack.c.l.b16 %v2261
    %v2397 = vunpack.c.l.b16 %v2262
    %v2398 = vunpack.c.l.b16 %v2263
    %v2399 = vunpack.c.l.b16 %v2264
    %v2400 = vunpack.c.l.b16 %v2265
    %v2401 = vunpack.c.l.b16 %v2266
    %v2402 = vunpack.c.l.b16 %v2267
    %v2403 = vunpack.c.l.b16 %v2268
    %v2404 = vunpack.c.l.b16 %v2269
    %v2405 = vunpack.c.l.b16 %v2270
    %v2406 = vunpack.c.l.b16 %v2271
    %v2407 = vunpack.c.l.b16 %v2272
    %v2408 = vunpack.c.l.b16 %v2273
    %v2409 = vunpack.c.l.b16 %v2274
    %v2410 = vunpack.c.l.b16 %v2275
    %v2411 = vunpack.c.l.b16 %v2276
    %v2412 = vunpack.c.l.b16 %v2277
    %v2413 = vunpack.c.l.b16 %v2278
    %v2414 = vunpack.c.l.b16 %v2279
    %v2415 = vunpack.c.l.b16 %v2280
    %v2416 = vunpack.c.l.b16 %v2281
    %v2417 = vunpack.c.l.b16 %v2282
    %v2418 = vunpack.c.l.b16 %v2283
    %v2419 = vunpack.c.l.b16 %v2284
    %v2420 = vunpack.c.l.b16 %v2285
    %v2421 = vunpack.c.l.b16 %v2286
    %v2422 = vunpack.c.l.b16 %v2287
    %v2423 = vunpack.c.l.b16 %v2288
    %v2424 = vunpack.c.l.b16 %v2289
    %v2425 = vunpack.c.l.b16 %v2290
    %v2426 = vunpack.c.l.b16 %v2291
    %v2427 = vunpack.c.l.b16 %v2292
    %v2428 = vunpack.c.l.b16 %v2293
    %v2429 = vunpack.c.l.b16 %v2294
    %v2430 = vunpack.c.l.b16 %v2295
    %v2431 = vunpack.c.l.b16 %v2296
    %v2432 = vunpack.c.l.b16 %v2297
    %v2433 = vunpack.c.l.b16 %v2298
    %v2434 = vunpack.c.l.b16 %v2299
    %v2435 = vunpack.c.l.b16 %v2300
    %v2436 = vunpack.c.l.b16 %v2301
    %v2437 = vunpack.c.l.b16 %v2302
    %v2438 = vunpack.c.l.b16 %v2303
    %v2439 = vunpack.c.l.b16 %v2304
    %v2440 = vunpack.c.l.b16 %v2305
    %v2441 = vunpack.c.l.b16 %v2306
    %v2442 = vunpack.c.l.b16 %v2307
    %v2443 = vunpack.c.l.b16 %v2308
    %v2444 = vpack.c.b16 %v2381, %v2380
    %v2445 = vpack.c.b16 %v2383, %v2382
    %v2446 = vpack.c.b16 %v2385, %v2384
    %v2447 = vpack.c.b16 %v2387, %v2386
    %v2448 = vpack.c.b16 %v2389, %v2388
    %v2449 = vpack.c.b16 %v2391, %v2390
    %v2450 = vpack.c.b16 %v2393, %v2392
    %v2451 = vpack.c.b16 %v2395, %v2394
    %v2452 = vpack.c.b16 %v2397, %v2396
    %v2453 = vpack.c.b16 %v2399, %v2398
    %v2454 = vpack.c.b16 %v2401, %v2400
    %v2455 = vpack.c.b16 %v2403, %v2402
    %v2456 = vpack.c.b16 %v2405, %v2404
    %v2457 = vpack.c.b16 %v2407, %v2406
    %v2458 = vpack.c.b16 %v2409, %v2408
    %v2459 = vpack.c.b16 %v2411, %v2410
    %v2460 = vpack.c.b16 %v2413, %v2412
    %v2461 = vpack.c.b16 %v2415, %v2414
    %v2462 = vpack.c.b16 %v2417, %v2416
    %v2463 = vpack.c.b16 %v2419, %v2418
    %v2464 = vpack.c.b16 %v2421, %v2420
    %v2465 = vpack.c.b16 %v2423, %v2422
    %v2466 = vpack.c.b16 %v2425, %v2424
    %v2467 = vpack.c.b16 %v2427, %v2426
    %v2468 = vpack.c.b16 %v2429, %v2428
    %v2469 = vpack.c.b16 %v2431, %v2430
    %v2470 = vpack.c.b16 %v2433, %v2432
    %v2471 = vpack.c.b16 %v2435, %v2434
    %v2472 = vpack.c.b16 %v2437, %v2436
    %v2473 = vpack.c.b16 %v2439, %v2438
    %v2474 = vpack.c.b16 %v2441, %v2440
    %v2475 = vpack.c.b16 %v2443, %v2442
    %2508 = vmatprep.subr.bf16.mxu0 0
    %2509 = vmatpush1.bf16.msra.mxu0 %v2444
    %2510 = vmatprep.subr.bf16.mxu0 0
    %2511 = vmatpush1.bf16.msra.mxu0 %v2445
    %2512 = vmatprep.subr.bf16.mxu0 0
    %2513 = vmatpush1.bf16.msra.mxu0 %v2446
    %2514 = vmatprep.subr.bf16.mxu0 0
    %2515 = vmatpush1.bf16.msra.mxu0 %v2447
    %2516 = vmatprep.subr.bf16.mxu0 0
    %2517 = vmatpush1.bf16.msra.mxu0 %v2448
    %2518 = vmatprep.subr.bf16.mxu0 0
    %2519 = vmatpush1.bf16.msra.mxu0 %v2449
    %2520 = vmatprep.subr.bf16.mxu0 0
    %2521 = vmatpush1.bf16.msra.mxu0 %v2450
    %2522 = vmatprep.subr.bf16.mxu0 0
    %2523 = vmatpush1.bf16.msra.mxu0 %v2451
    %2524 = vmatprep.subr.bf16.mxu0 0
    %2525 = vmatpush1.bf16.msra.mxu0 %v2452
    %2526 = vmatprep.subr.bf16.mxu0 0
    %2527 = vmatpush1.bf16.msra.mxu0 %v2453
    %2528 = vmatprep.subr.bf16.mxu0 0
    %2529 = vmatpush1.bf16.msra.mxu0 %v2454
    %2530 = vmatprep.subr.bf16.mxu0 0
    %2531 = vmatpush1.bf16.msra.mxu0 %v2455
    %2532 = vmatprep.subr.bf16.mxu0 0
    %2533 = vmatpush1.bf16.msra.mxu0 %v2456
    %2534 = vmatprep.subr.bf16.mxu0 0
    %2535 = vmatpush1.bf16.msra.mxu0 %v2457
    %2536 = vmatprep.subr.bf16.mxu0 0
    %2537 = vmatpush1.bf16.msra.mxu0 %v2458
    %2538 = vmatprep.subr.bf16.mxu0 0
    %2539 = vmatpush1.bf16.msra.mxu0 %v2459
    %2540 = vmatprep.mubr.bf16.mxu0 %v2242
    %2541 = vmatmul.mubr.bf16.gmra.mrb[0].mxu0 %v2241
    %v2542 = vpop.f32.mrb[0].mxu0
    %v2543 = vadd.f32 %v2314, %v2542
    %v2544 = vpop.f32.mrb[0].mxu0
    %v2545 = vpop.f32.mrb[0].mxu0
    %v2546 = vadd.f32 %v2314, %v2545
    %v2547 = vpop.f32.mrb[0].mxu0
    %2548 = vdwg.mxu0
    %2549 = vmatprep.subr.bf16.mxu0 0
    %2550 = vmatpush1.bf16.msra.mxu0 %v2460
    %2551 = vmatprep.subr.bf16.mxu0 0
    %2552 = vmatpush1.bf16.msra.mxu0 %v2461
    %2553 = vmatprep.subr.bf16.mxu0 0
    %2554 = vmatpush1.bf16.msra.mxu0 %v2462
    %2555 = vmatprep.subr.bf16.mxu0 0
    %2556 = vmatpush1.bf16.msra.mxu0 %v2463
    %2557 = vmatprep.subr.bf16.mxu0 0
    %2558 = vmatpush1.bf16.msra.mxu0 %v2464
    %2559 = vmatprep.subr.bf16.mxu0 0
    %2560 = vmatpush1.bf16.msra.mxu0 %v2465
    %2561 = vmatprep.subr.bf16.mxu0 0
    %2562 = vmatpush1.bf16.msra.mxu0 %v2466
    %2563 = vmatprep.subr.bf16.mxu0 0
    %2564 = vmatpush1.bf16.msra.mxu0 %v2467
    %2565 = vmatprep.subr.bf16.mxu0 0
    %2566 = vmatpush1.bf16.msra.mxu0 %v2468
    %2567 = vmatprep.subr.bf16.mxu0 0
    %2568 = vmatpush1.bf16.msra.mxu0 %v2469
    %2569 = vmatprep.subr.bf16.mxu0 0
    %2570 = vmatpush1.bf16.msra.mxu0 %v2470
    %2571 = vmatprep.subr.bf16.mxu0 0
    %2572 = vmatpush1.bf16.msra.mxu0 %v2471
    %2573 = vmatprep.subr.bf16.mxu0 0
    %2574 = vmatpush1.bf16.msra.mxu0 %v2472
    %2575 = vmatprep.subr.bf16.mxu0 0
    %2576 = vmatpush1.bf16.msra.mxu0 %v2473
    %2577 = vmatprep.subr.bf16.mxu0 0
    %2578 = vmatpush1.bf16.msra.mxu0 %v2474
    %2579 = vmatprep.subr.bf16.mxu0 0
    %2580 = vmatpush1.bf16.msra.mxu0 %v2475
    %2581 = vmatprep.mubr.bf16.mxu0 %v2244
    %2582 = vmatmul.mubr.bf16.gmra.mrb[0].mxu0 %v2243
    %v2583 = vpop.f32.mrb[0].mxu0
    %v2584 = vadd.f32 %v2543, %v2583
    %v2585 = vpop.f32.mrb[0].mxu0
    %v2586 = vpop.f32.mrb[0].mxu0
    %v2587 = vadd.f32 %v2546, %v2586
    %v2588 = vpop.f32.mrb[0].mxu0
    %2589 = vdwg.mxu0
    %v2590 = vpack.c.bf16 %v2587, %v2584
    %v2592 = vunpack.c.l.b16 %v2590
    %v2593 = vunpack.c.h.b16 %v2590
    %v2594 = vpack.c.b16 %v2592, %v2592
    %v2595 = vpack.c.b16 %v2593, %v2593
    %2598 = vst [vmem:[#allocation10] sm:$0xf] %v2594
    %2599 = vst [vmem:[#allocation10 + $0x4] sm:$0xf] %v2595
    // Predicated region
    $region42: #{neural_net_forward.1} parent=1 // pred_check
      _
    $region43: #{neural_net_forward.1} parent=1 // pred_check_branch
      %2601 = sbr.rel (0) target = $region45
    $region44: #{neural_net_forward.1} parent=1 // pred_region
      // Predicated region
      $region46: #{neural_net_forward.1} parent=44 // pred_check
        _
      $region47: #{neural_net_forward.1} parent=44 // pred_check_branch
        %2603 = sbr.rel (0) target = $region49
      $region48: #{neural_net_forward.1} parent=44 // pred_region
        // Predicated region
        $region50: #{neural_net_forward.1} parent=48 // pred_check
          _
        $region51: #{neural_net_forward.1} parent=48 // pred_check_branch
          %2605 = sbr.rel target = $region53
        $region52: #{neural_net_forward.1} parent=48 // pred_region
          // Predicated region
          $region65: #{neural_net_forward.1} parent=52 // pred_check
            _
          $region66: #{neural_net_forward.1} parent=52 // pred_check_branch
            %2620 = sbr.rel (0) target = $region68
          $region67: #{neural_net_forward.1} parent=52 // pred_region
            loop: start=0, step=1, limit=1
            $region69: #{neural_net_forward.1} parent=67 // loop_pre_header
              _
            $region70: #{neural_net_forward.1} parent=67 // loop_header
              %s2623 = sphi 0, %s2627
              %p2624 = scmp.ge.s32.totalorder %s2623, 1
              %s2628 = sphi [#allocation10], [#allocation10]
              %s2629 = sphi %s5, %s5
            $region71: #{neural_net_forward.1} parent=67 // loop_header_branch
              %2626 = sbr.rel (%p2624) target = $region75
            $region72: #{neural_net_forward.1} parent=67 // loop_body
              %v2630 = vld [vmem:[%s2628] sm:$0xf]
              %2631 = vst [vmem:[%s2629] sm:$0xf] %v2630
            $region73: #{neural_net_forward.1} parent=67 // loop_footer
              %s2627 = sadd.s32 1, %s2623
            $region74: #{neural_net_forward.1} parent=67 // loop_footer_branch
              %2622 = sbr.rel target = $region70
            $region75: #{neural_net_forward.1} parent=67 // loop_exit
              _
          $region68: #{neural_net_forward.1} parent=52 // pred_fallthru
            _
        $region53: #{neural_net_forward.1} parent=48 // pred_fallthru
          _
        // Predicated region
        $region54: #{neural_net_forward.1} parent=48 // pred_check
          _
        $region55: #{neural_net_forward.1} parent=48 // pred_check_branch
          %2607 = sbr.rel (0) target = $region57
        $region56: #{neural_net_forward.1} parent=48 // pred_region
          loop: start=0, step=1, limit=1
          $region58: #{neural_net_forward.1} parent=56 // loop_pre_header
            _
          $region59: #{neural_net_forward.1} parent=56 // loop_header
            %s2610 = sphi 0, %s2614
            %p2611 = scmp.ge.s32.totalorder %s2610, 1
            %s2615 = sphi [#allocation10], [#allocation10]
            %s2616 = sphi %s5, %s5
          $region60: #{neural_net_forward.1} parent=56 // loop_header_branch
            %2613 = sbr.rel (%p2611) target = $region64
          $region61: #{neural_net_forward.1} parent=56 // loop_body
            %v2617 = vld [vmem:[%s2615] sm:$0xf]
            %2618 = vst [vmem:[%s2616] sm:$0xf] %v2617
          $region62: #{neural_net_forward.1} parent=56 // loop_footer
            %s2614 = sadd.s32 1, %s2610
          $region63: #{neural_net_forward.1} parent=56 // loop_footer_branch
            %2609 = sbr.rel target = $region59
          $region64: #{neural_net_forward.1} parent=56 // loop_exit
            _
        $region57: #{neural_net_forward.1} parent=48 // pred_fallthru
          _
      $region49: #{neural_net_forward.1} parent=44 // pred_fallthru
        _
      %2632 = vnop
    $region45: #{neural_net_forward.1} parent=1 // pred_fallthru
      _
    // Predicated region
    $region76: #{neural_net_forward.1} parent=1 // pred_check
      _
    $region77: #{neural_net_forward.1} parent=1 // pred_check_branch
      %2634 = sbr.rel (0) target = $region79
    $region78: #{neural_net_forward.1} parent=1 // pred_region
      _
    $region79: #{neural_net_forward.1} parent=1 // pred_fallthru
      _
    %2635 = vsyncpa [#allocation3], 1
    %2636 = vsyncpa [#allocation5], 1
    %2637 = vsyncpa [#allocation8], 1

</llo_original>
